<compile_context>
chip_gen: v7x
topology: tpu7x:2x2x1
jax: 0.10.0
libtpu: 0.0.40
codegen_flags: <defaults>
</compile_context>

<pallas_src>
import functools

import jax
import jax.numpy as jnp
import numpy as np
from jax.experimental import pallas as pl
from jax.experimental.pallas import tpu as pltpu

_LN_EPS = 1e-5
_GELU_C = 0.7978845608028654  # sqrt(2/pi)


def _layer_norm(v, gamma, beta):
    mu = jnp.mean(v, axis=-1, keepdims=True)
    var = jnp.mean(jnp.square(v - mu), axis=-1, keepdims=True)
    return (v - mu) * jax.lax.rsqrt(var + _LN_EPS) * gamma + beta


def encoder_kernel(x_ref,
                   g1_ref, be1_ref,
                   wq_ref, bq_ref, wk_ref, bk_ref, wv_ref, bv_ref,
                   g2_ref, be2_ref,
                   w1_ref, b1_ref, w2_ref, b2_ref,
                   o_ref, *, n_heads):
    f32 = jnp.float32
    bf16 = jnp.bfloat16

    x = x_ref[0].astype(f32)                      # (S, E) — one batch element
    S, E = x.shape
    d_head = E // n_heads

    # ---------- attention branch: x + SelfAttention(LayerNorm1(x)) ----------
    xn1 = _layer_norm(x, g1_ref[...], be1_ref[...])
    xn1_b = xn1.astype(bf16)                      # bf16 MXU operand, f32 accumulation

    # Weights arrive pre-transposed to (in, out) bf16 -> plain (M,K)@(K,N) matmuls.
    q = jnp.dot(xn1_b, wq_ref[...], preferred_element_type=f32) + bq_ref[...]
    k = jnp.dot(xn1_b, wk_ref[...], preferred_element_type=f32) + bk_ref[...]
    v = jnp.dot(xn1_b, wv_ref[...], preferred_element_type=f32) + bv_ref[...]

    def split_heads(t):                           # (S, E) f32 -> (H, S, d_head) bf16
        return jnp.stack(
            [t[:, h * d_head:(h + 1) * d_head] for h in range(n_heads)], axis=0
        ).astype(bf16)

    qh, kh, vh = split_heads(q), split_heads(k), split_heads(v)

    # NOTE: the reference module applies NO 1/sqrt(d_head) scaling — matched here.
    s = jnp.einsum('hqd,hkd->hqk', qh, kh, preferred_element_type=f32)    # (H, S, S) f32
    s = s - jnp.max(s, axis=-1, keepdims=True)
    p = jnp.exp(s)
    p = p * pl.reciprocal(jnp.sum(p, axis=-1, keepdims=True), approx=True)
    o_heads = jnp.einsum('hqk,hkd->hqd', p.astype(bf16), vh,
                         preferred_element_type=f32)                      # (H, S, d) f32
    attn = jnp.concatenate([o_heads[h] for h in range(n_heads)], axis=-1)  # (S, E)
    x1 = x + attn

    # ---------- MLP branch: x1 + fc2(GELU(fc1(LayerNorm2(x1)))) ----------
    # TODO(synk): dropout1/dropout2 are inference-mode identities here.
    xn2 = _layer_norm(x1, g2_ref[...], be2_ref[...])
    h_mid = jnp.dot(xn2.astype(bf16), w1_ref[...], preferred_element_type=f32) + b1_ref[...]
    # TODO(synk): nn.GELU() defaults to the exact erf GELU; tanh approximation used here.
    h_mid = 0.5 * h_mid * (1.0 + jnp.tanh(_GELU_C * (h_mid + 0.044715 * h_mid * h_mid * h_mid)))
    y = jnp.dot(h_mid.astype(bf16), w2_ref[...], preferred_element_type=f32) + b2_ref[...]

    o_ref[0] = (x1 + y).astype(o_ref.dtype)


def prepare_params(params):
    """One-time, host-side parameter prep (amortized over every forward call):
       Linear weights (out, in) -> (in, out) bf16; 1-D vectors -> (1, N) f32."""
    r2 = lambda a: jnp.asarray(a, jnp.float32).reshape(1, -1)
    t16 = lambda w: jnp.asarray(w, jnp.float32).T.astype(jnp.bfloat16)
    return {
        "ln1_g": r2(params["ln1_g"]), "ln1_b": r2(params["ln1_b"]),
        "wq": t16(params["wq"]), "bq": r2(params["bq"]),
        "wk": t16(params["wk"]), "bk": r2(params["bk"]),
        "wv": t16(params["wv"]), "bv": r2(params["bv"]),
        "ln2_g": r2(params["ln2_g"]), "ln2_b": r2(params["ln2_b"]),
        "w1": t16(params["w1"]), "b1": r2(params["b1"]),
        "w2": t16(params["w2"]), "b2": r2(params["b2"]),
    }


def encoder_forward(x, prepped, n_heads):
    """x: (B, S, E) f32; prepped = prepare_params(pytorch_params)."""
    B, S, E = x.shape
    F = prepped["w1"].shape[1]          # w1 is (E, F) after host transpose

    def full(shape):                    # whole-array block, constant index -> fetched once
        zeros = (0,) * len(shape)
        return pl.BlockSpec(shape, lambda b, z=zeros: z)

    kernel = functools.partial(encoder_kernel, n_heads=n_heads)

    return pl.pallas_call(
        kernel,
        out_shape=jax.ShapeDtypeStruct((B, S, E), x.dtype),
        grid_spec=pltpu.PrefetchScalarGridSpec(
            num_scalar_prefetch=0,
            grid=(B,),                                          # TODO(synk): add a query-tile
            in_specs=[                                          # axis for deeper pipelines.
                pl.BlockSpec((1, S, E), lambda b: (b, 0, 0)),   # x (one batch row per step)
                full((1, E)), full((1, E)),                     # LN1 gamma, beta (f32)
                full((E, E)), full((1, E)),                     # Wq^T (bf16), bq
                full((E, E)), full((1, E)),                     # Wk^T (bf16), bk
                full((E, E)), full((1, E)),                     # Wv^T (bf16), bv
                full((1, E)), full((1, E)),                     # LN2 gamma, beta (f32)
                full((E, F)), full((1, F)),                     # fc1 W^T (bf16), b1
                full((F, E)), full((1, E)),                     # fc2 W^T (bf16), b2
            ],
            out_specs=pl.BlockSpec((1, S, E), lambda b: (b, 0, 0)),
        ),
        compiler_params=pltpu.CompilerParams(
            dimension_semantics=("parallel",),                  # shard batch across TCs
            vmem_limit_bytes=64 * 1024 * 1024,                  # above 16/32 MiB defaults,
        ),                                                      # within physical VMEM everywhere
    )(x,
      prepped["ln1_g"], prepped["ln1_b"],
      prepped["wq"], prepped["bq"],
      prepped["wk"], prepped["bk"],
      prepped["wv"], prepped["bv"],
      prepped["ln2_g"], prepped["ln2_b"],
      prepped["w1"], prepped["b1"],
      prepped["w2"], prepped["b2"])


def reference_forward(x, params, n_heads):
    """Pure numpy float64 reference reproducing the PyTorch Encoder math."""
    p = {k: np.asarray(v, np.float64) for k, v in params.items()}
    x = np.asarray(x, np.float64)
    B, S, E = x.shape
    d_head = E // n_heads

    def ln(v, g, b):
        mu = v.mean(-1, keepdims=True)
        var = ((v - mu) ** 2).mean(-1, keepdims=True)
        return (v - mu) / np.sqrt(var + _LN_EPS) * g + b

    def gelu(v):  # same tanh approximation as the kernel
        return 0.5 * v * (1.0 + np.tanh(_GELU_C * (v + 0.044715 * v ** 3)))

    xn1 = ln(x, p["ln1_g"], p["ln1_b"])
    q = xn1 @ p["wq"].T + p["bq"]
    k = xn1 @ p["wk"].T + p["bk"]
    v = xn1 @ p["wv"].T + p["bv"]
    q = q.reshape(B, S, n_heads, d_head).transpose(0, 2, 1, 3)
    k = k.reshape(B, S, n_heads, d_head).transpose(0, 2, 1, 3)
    v = v.reshape(B, S, n_heads, d_head).transpose(0, 2, 1, 3)
    s = q @ np.swapaxes(k, -1, -2)           # no 1/sqrt(d) scaling, as in the module
    s = s - s.max(-1, keepdims=True)
    pr = np.exp(s)
    pr = pr / pr.sum(-1, keepdims=True)
    a = (pr @ v).transpose(0, 2, 1, 3).reshape(B, S, E)
    x1 = x + a

    xn2 = ln(x1, p["ln2_g"], p["ln2_b"])
    h = gelu(xn2 @ p["w1"].T + p["b1"])
    y = h @ p["w2"].T + p["b2"]
    return x1 + y


if __name__ == "__main__":
    # Small shapes consistent with the module: batch=2, seq=8, embed_dim=32,
    # n_attention_heads=4, forward_mul=2.  (Correctness-only shapes; for real perf
    # use E, S multiples of 128 so lanes/MXU are not mostly padding.)
    B, S, E = 2, 8, 32
    n_heads = 4
    forward_mul = 2
    F = E * forward_mul

    key = jax.random.PRNGKey(0)
    keys = jax.random.split(key, 16)

    def u(k, shape, fan_in):  # nn.Linear-style U(-1/sqrt(fan_in), 1/sqrt(fan_in))
        bound = 1.0 / np.sqrt(fan_in)
        return jax.random.uniform(k, shape, minval=-bound, maxval=bound, dtype=jnp.float32)

    x = jax.random.normal(keys[0], (B, S, E), dtype=jnp.float32)
    params = {
        "ln1_g": 1.0 + 0.1 * jax.random.normal(keys[1], (E,), dtype=jnp.float32),
        "ln1_b": 0.05 * jax.random.normal(keys[2], (E,), dtype=jnp.float32),
        "wq": u(keys[3], (E, E), E), "bq": u(keys[4], (E,), E),
        "wk": u(keys[5], (E, E), E), "bk": u(keys[6], (E,), E),
        "wv": u(keys[7], (E, E), E), "bv": u(keys[8], (E,), E),
        "ln2_g": 1.0 + 0.1 * jax.random.normal(keys[9], (E,), dtype=jnp.float32),
        "ln2_b": 0.05 * jax.random.normal(keys[10], (E,), dtype=jnp.float32),
        "w1": u(keys[11], (F, E), E), "b1": u(keys[12], (F,), E),
        "w2": u(keys[13], (E, F), F), "b2": u(keys[14], (E,), F),
    }

    prepped = prepare_params(params)        # one-time host-side transpose + bf16 cast
    out = encoder_forward(x, prepped, n_heads)
    out = jax.block_until_ready(out)

    ref = reference_forward(x, params, n_heads)
    assert out.shape == (B, S, E)
    # bf16 MXU operands (f32 accumulation) -> tolerance loosened accordingly.
    assert np.allclose(np.asarray(out, np.float64), ref, atol=3e-2, rtol=3e-2), \
        "mismatch vs reference"

    print("KERNEL_OK")
</pallas_src>

<mosaic_0001>
module attributes {stable_mosaic.version = 11 : i64} {
  func.func @encoder_kernel(%arg0: i32, %arg1: memref<1x8x32xf32, #tpu.memory_space<vmem>>, %arg2: memref<1x32xf32, #tpu.memory_space<vmem>>, %arg3: memref<1x32xf32, #tpu.memory_space<vmem>>, %arg4: memref<32x32xbf16, #tpu.memory_space<vmem>>, %arg5: memref<1x32xf32, #tpu.memory_space<vmem>>, %arg6: memref<32x32xbf16, #tpu.memory_space<vmem>>, %arg7: memref<1x32xf32, #tpu.memory_space<vmem>>, %arg8: memref<32x32xbf16, #tpu.memory_space<vmem>>, %arg9: memref<1x32xf32, #tpu.memory_space<vmem>>, %arg10: memref<1x32xf32, #tpu.memory_space<vmem>>, %arg11: memref<1x32xf32, #tpu.memory_space<vmem>>, %arg12: memref<32x64xbf16, #tpu.memory_space<vmem>>, %arg13: memref<1x64xf32, #tpu.memory_space<vmem>>, %arg14: memref<64x32xbf16, #tpu.memory_space<vmem>>, %arg15: memref<1x32xf32, #tpu.memory_space<vmem>>, %arg16: memref<1x8x32xf32, #tpu.memory_space<vmem>>) attributes {dimension_semantics = [#tpu.dimension_semantics<parallel>], iteration_bounds = array<i64: 2>, scalar_prefetch = 0 : i64, scratch_operands = 0 : i64, tpu.core_type = #tpu.core_type<tc>, window_params = [{transform_indices = @transform_0, window_bounds = array<i64: 1, 8, 32>}, {pipeline_mode = #tpu.pipeline_mode<synchronous>, transform_indices = @transform_1, window_bounds = array<i64: 1, 32>}, {pipeline_mode = #tpu.pipeline_mode<synchronous>, transform_indices = @transform_2, window_bounds = array<i64: 1, 32>}, {pipeline_mode = #tpu.pipeline_mode<synchronous>, transform_indices = @transform_3, window_bounds = array<i64: 32, 32>}, {pipeline_mode = #tpu.pipeline_mode<synchronous>, transform_indices = @transform_4, window_bounds = array<i64: 1, 32>}, {pipeline_mode = #tpu.pipeline_mode<synchronous>, transform_indices = @transform_5, window_bounds = array<i64: 32, 32>}, {pipeline_mode = #tpu.pipeline_mode<synchronous>, transform_indices = @transform_6, window_bounds = array<i64: 1, 32>}, {pipeline_mode = #tpu.pipeline_mode<synchronous>, transform_indices = @transform_7, window_bounds = array<i64: 32, 32>}, {pipeline_mode = #tpu.pipeline_mode<synchronous>, transform_indices = @transform_8, window_bounds = array<i64: 1, 32>}, {pipeline_mode = #tpu.pipeline_mode<synchronous>, transform_indices = @transform_9, window_bounds = array<i64: 1, 32>}, {pipeline_mode = #tpu.pipeline_mode<synchronous>, transform_indices = @transform_10, window_bounds = array<i64: 1, 32>}, {pipeline_mode = #tpu.pipeline_mode<synchronous>, transform_indices = @transform_11, window_bounds = array<i64: 32, 64>}, {pipeline_mode = #tpu.pipeline_mode<synchronous>, transform_indices = @transform_12, window_bounds = array<i64: 1, 64>}, {pipeline_mode = #tpu.pipeline_mode<synchronous>, transform_indices = @transform_13, window_bounds = array<i64: 64, 32>}, {pipeline_mode = #tpu.pipeline_mode<synchronous>, transform_indices = @transform_14, window_bounds = array<i64: 1, 32>}, {transform_indices = @transform_15, window_bounds = array<i64: 1, 8, 32>}]} {
    %c0 = arith.constant 0 : index
    %c0_0 = arith.constant 0 : index
    %c0_1 = arith.constant 0 : index
    %0 = vector.load %arg1[%c0, %c0_0, %c0_1] : memref<1x8x32xf32, #tpu.memory_space<vmem>>, vector<1x8x32xf32>
    %1 = vector.shape_cast %0 : vector<1x8x32xf32> to vector<8x32xf32>
    %c0_2 = arith.constant 0 : index
    %c0_3 = arith.constant 0 : index
    %2 = vector.load %arg2[%c0_2, %c0_3] : memref<1x32xf32, #tpu.memory_space<vmem>>, vector<1x32xf32>
    %c0_4 = arith.constant 0 : index
    %c0_5 = arith.constant 0 : index
    %3 = vector.load %arg3[%c0_4, %c0_5] : memref<1x32xf32, #tpu.memory_space<vmem>>, vector<1x32xf32>
    %cst = arith.constant dense<0.000000e+00> : vector<8xf32>
    %4 = vector.multi_reduction <add>, %1, %cst [1] : vector<8x32xf32> to vector<8xf32>
    %5 = vector.shape_cast %4 : vector<8xf32> to vector<8x1xf32>
    %cst_6 = arith.constant 3.200000e+01 : f32
    %6 = vector.broadcast %cst_6 : f32 to vector<8x1xf32>
    %7 = arith.divf %5, %6 : vector<8x1xf32>
    %8 = vector.broadcast %7 : vector<8x1xf32> to vector<8x32xf32>
    %9 = arith.subf %1, %8 : vector<8x32xf32>
    %10 = arith.mulf %9, %9 : vector<8x32xf32>
    %cst_7 = arith.constant dense<0.000000e+00> : vector<8xf32>
    %11 = vector.multi_reduction <add>, %10, %cst_7 [1] : vector<8x32xf32> to vector<8xf32>
    %12 = vector.shape_cast %11 : vector<8xf32> to vector<8x1xf32>
    %cst_8 = arith.constant 3.200000e+01 : f32
    %13 = vector.broadcast %cst_8 : f32 to vector<8x1xf32>
    %14 = arith.divf %12, %13 : vector<8x1xf32>
    %15 = vector.broadcast %7 : vector<8x1xf32> to vector<8x32xf32>
    %16 = arith.subf %1, %15 : vector<8x32xf32>
    %cst_9 = arith.constant 9.99999974E-6 : f32
    %17 = vector.broadcast %cst_9 : f32 to vector<8x1xf32>
    %18 = arith.addf %14, %17 : vector<8x1xf32>
    %19 = math.rsqrt %18 : vector<8x1xf32>
    %20 = vector.broadcast %19 : vector<8x1xf32> to vector<8x32xf32>
    %21 = arith.mulf %16, %20 : vector<8x32xf32>
    %22 = vector.broadcast %2 : vector<1x32xf32> to vector<8x32xf32>
    %23 = arith.mulf %21, %22 : vector<8x32xf32>
    %24 = vector.broadcast %3 : vector<1x32xf32> to vector<8x32xf32>
    %25 = arith.addf %23, %24 : vector<8x32xf32>
    %26 = arith.truncf %25 : vector<8x32xf32> to vector<8x32xbf16>
    %c0_10 = arith.constant 0 : index
    %c0_11 = arith.constant 0 : index
    %27 = vector.load %arg4[%c0_10, %c0_11] : memref<32x32xbf16, #tpu.memory_space<vmem>>, vector<32x32xbf16>
    %cst_12 = arith.constant dense<0.000000e+00> : vector<8x32xf32>
    %28 = tpu.matmul %26, %27, %cst_12 {dimension_numbers = #tpu.dot_dimension_numbers<[1], [0], [0], [1], [0, 0, 1, 1], [], []>} : vector<8x32xbf16>, vector<32x32xbf16>, vector<8x32xf32> -> vector<8x32xf32>
    %c0_13 = arith.constant 0 : index
    %c0_14 = arith.constant 0 : index
    %29 = vector.load %arg5[%c0_13, %c0_14] : memref<1x32xf32, #tpu.memory_space<vmem>>, vector<1x32xf32>
    %30 = vector.broadcast %29 : vector<1x32xf32> to vector<8x32xf32>
    %31 = arith.addf %28, %30 : vector<8x32xf32>
    %c0_15 = arith.constant 0 : index
    %c0_16 = arith.constant 0 : index
    %32 = vector.load %arg6[%c0_15, %c0_16] : memref<32x32xbf16, #tpu.memory_space<vmem>>, vector<32x32xbf16>
    %cst_17 = arith.constant dense<0.000000e+00> : vector<8x32xf32>
    %33 = tpu.matmul %26, %32, %cst_17 {dimension_numbers = #tpu.dot_dimension_numbers<[1], [0], [0], [1], [0, 0, 1, 1], [], []>} : vector<8x32xbf16>, vector<32x32xbf16>, vector<8x32xf32> -> vector<8x32xf32>
    %c0_18 = arith.constant 0 : index
    %c0_19 = arith.constant 0 : index
    %34 = vector.load %arg7[%c0_18, %c0_19] : memref<1x32xf32, #tpu.memory_space<vmem>>, vector<1x32xf32>
    %35 = vector.broadcast %34 : vector<1x32xf32> to vector<8x32xf32>
    %36 = arith.addf %33, %35 : vector<8x32xf32>
    %c0_20 = arith.constant 0 : index
    %c0_21 = arith.constant 0 : index
    %37 = vector.load %arg8[%c0_20, %c0_21] : memref<32x32xbf16, #tpu.memory_space<vmem>>, vector<32x32xbf16>
    %cst_22 = arith.constant dense<0.000000e+00> : vector<8x32xf32>
    %38 = tpu.matmul %26, %37, %cst_22 {dimension_numbers = #tpu.dot_dimension_numbers<[1], [0], [0], [1], [0, 0, 1, 1], [], []>} : vector<8x32xbf16>, vector<32x32xbf16>, vector<8x32xf32> -> vector<8x32xf32>
    %c0_23 = arith.constant 0 : index
    %c0_24 = arith.constant 0 : index
    %39 = vector.load %arg9[%c0_23, %c0_24] : memref<1x32xf32, #tpu.memory_space<vmem>>, vector<1x32xf32>
    %40 = vector.broadcast %39 : vector<1x32xf32> to vector<8x32xf32>
    %41 = arith.addf %38, %40 : vector<8x32xf32>
    %42 = vector.extract_strided_slice %31 {offsets = [0, 0], sizes = [8, 8], strides = [1, 1]} : vector<8x32xf32> to vector<8x8xf32>
    %43 = vector.extract_strided_slice %31 {offsets = [0, 8], sizes = [8, 8], strides = [1, 1]} : vector<8x32xf32> to vector<8x8xf32>
    %44 = vector.extract_strided_slice %31 {offsets = [0, 16], sizes = [8, 8], strides = [1, 1]} : vector<8x32xf32> to vector<8x8xf32>
    %45 = vector.extract_strided_slice %31 {offsets = [0, 24], sizes = [8, 8], strides = [1, 1]} : vector<8x32xf32> to vector<8x8xf32>
    %46 = vector.shape_cast %42 : vector<8x8xf32> to vector<1x8x8xf32>
    %47 = vector.shape_cast %43 : vector<8x8xf32> to vector<1x8x8xf32>
    %48 = vector.shape_cast %44 : vector<8x8xf32> to vector<1x8x8xf32>
    %49 = vector.shape_cast %45 : vector<8x8xf32> to vector<1x8x8xf32>
    %50 = tpu.concatenate %46, %47, %48, %49 in 0 : vector<1x8x8xf32>, vector<1x8x8xf32>, vector<1x8x8xf32>, vector<1x8x8xf32> -> vector<4x8x8xf32>
    %51 = arith.truncf %50 : vector<4x8x8xf32> to vector<4x8x8xbf16>
    %52 = vector.extract_strided_slice %36 {offsets = [0, 0], sizes = [8, 8], strides = [1, 1]} : vector<8x32xf32> to vector<8x8xf32>
    %53 = vector.extract_strided_slice %36 {offsets = [0, 8], sizes = [8, 8], strides = [1, 1]} : vector<8x32xf32> to vector<8x8xf32>
    %54 = vector.extract_strided_slice %36 {offsets = [0, 16], sizes = [8, 8], strides = [1, 1]} : vector<8x32xf32> to vector<8x8xf32>
    %55 = vector.extract_strided_slice %36 {offsets = [0, 24], sizes = [8, 8], strides = [1, 1]} : vector<8x32xf32> to vector<8x8xf32>
    %56 = vector.shape_cast %52 : vector<8x8xf32> to vector<1x8x8xf32>
    %57 = vector.shape_cast %53 : vector<8x8xf32> to vector<1x8x8xf32>
    %58 = vector.shape_cast %54 : vector<8x8xf32> to vector<1x8x8xf32>
    %59 = vector.shape_cast %55 : vector<8x8xf32> to vector<1x8x8xf32>
    %60 = tpu.concatenate %56, %57, %58, %59 in 0 : vector<1x8x8xf32>, vector<1x8x8xf32>, vector<1x8x8xf32>, vector<1x8x8xf32> -> vector<4x8x8xf32>
    %61 = arith.truncf %60 : vector<4x8x8xf32> to vector<4x8x8xbf16>
    %62 = vector.extract_strided_slice %41 {offsets = [0, 0], sizes = [8, 8], strides = [1, 1]} : vector<8x32xf32> to vector<8x8xf32>
    %63 = vector.extract_strided_slice %41 {offsets = [0, 8], sizes = [8, 8], strides = [1, 1]} : vector<8x32xf32> to vector<8x8xf32>
    %64 = vector.extract_strided_slice %41 {offsets = [0, 16], sizes = [8, 8], strides = [1, 1]} : vector<8x32xf32> to vector<8x8xf32>
    %65 = vector.extract_strided_slice %41 {offsets = [0, 24], sizes = [8, 8], strides = [1, 1]} : vector<8x32xf32> to vector<8x8xf32>
    %66 = vector.shape_cast %62 : vector<8x8xf32> to vector<1x8x8xf32>
    %67 = vector.shape_cast %63 : vector<8x8xf32> to vector<1x8x8xf32>
    %68 = vector.shape_cast %64 : vector<8x8xf32> to vector<1x8x8xf32>
    %69 = vector.shape_cast %65 : vector<8x8xf32> to vector<1x8x8xf32>
    %70 = tpu.concatenate %66, %67, %68, %69 in 0 : vector<1x8x8xf32>, vector<1x8x8xf32>, vector<1x8x8xf32>, vector<1x8x8xf32> -> vector<4x8x8xf32>
    %71 = arith.truncf %70 : vector<4x8x8xf32> to vector<4x8x8xbf16>
    "tpu.trace_start"() <{level = 10 : i32, message = "hqd,hkd->hqk"}> : () -> ()
    %cst_25 = arith.constant dense<0.000000e+00> : vector<4x8x8xf32>
    %72 = tpu.matmul %51, %61, %cst_25 {dimension_numbers = #tpu.dot_dimension_numbers<[2], [2], [1], [1], [0, 0, 0, 1, 1, 1], [0], [0]>} : vector<4x8x8xbf16>, vector<4x8x8xbf16>, vector<4x8x8xf32> -> vector<4x8x8xf32>
    "tpu.trace_stop"() : () -> ()
    %cst_26 = arith.constant dense<0xFF800000> : vector<4x8xf32>
    %73 = vector.multi_reduction <maximumf>, %72, %cst_26 [2] : vector<4x8x8xf32> to vector<4x8xf32>
    %74 = vector.shape_cast %73 : vector<4x8xf32> to vector<4x8x1xf32>
    %75 = vector.broadcast %74 : vector<4x8x1xf32> to vector<4x8x8xf32>
    %76 = arith.subf %72, %75 : vector<4x8x8xf32>
    %77 = math.exp %76 : vector<4x8x8xf32>
    %cst_27 = arith.constant dense<0.000000e+00> : vector<4x8xf32>
    %78 = vector.multi_reduction <add>, %77, %cst_27 [2] : vector<4x8x8xf32> to vector<4x8xf32>
    %79 = vector.shape_cast %78 : vector<4x8xf32> to vector<4x8x1xf32>
    %80 = tpu.reciprocal %79 {approx = true} : vector<4x8x1xf32> -> vector<4x8x1xf32>
    %81 = vector.broadcast %80 : vector<4x8x1xf32> to vector<4x8x8xf32>
    %82 = arith.mulf %77, %81 : vector<4x8x8xf32>
    %83 = arith.truncf %82 : vector<4x8x8xf32> to vector<4x8x8xbf16>
    "tpu.trace_start"() <{level = 10 : i32, message = "hqk,hkd->hqd"}> : () -> ()
    %cst_28 = arith.constant dense<0.000000e+00> : vector<4x8x8xf32>
    %84 = tpu.matmul %83, %71, %cst_28 {dimension_numbers = #tpu.dot_dimension_numbers<[2], [1], [1], [2], [0, 0, 0, 1, 1, 2], [0], [0]>} : vector<4x8x8xbf16>, vector<4x8x8xbf16>, vector<4x8x8xf32> -> vector<4x8x8xf32>
    "tpu.trace_stop"() : () -> ()
    %85 = vector.extract_strided_slice %84 {offsets = [0, 0, 0], sizes = [1, 8, 8], strides = [1, 1, 1]} : vector<4x8x8xf32> to vector<1x8x8xf32>
    %86 = vector.shape_cast %85 : vector<1x8x8xf32> to vector<8x8xf32>
    %87 = vector.extract_strided_slice %84 {offsets = [1, 0, 0], sizes = [1, 8, 8], strides = [1, 1, 1]} : vector<4x8x8xf32> to vector<1x8x8xf32>
    %88 = vector.shape_cast %87 : vector<1x8x8xf32> to vector<8x8xf32>
    %89 = vector.extract_strided_slice %84 {offsets = [2, 0, 0], sizes = [1, 8, 8], strides = [1, 1, 1]} : vector<4x8x8xf32> to vector<1x8x8xf32>
    %90 = vector.shape_cast %89 : vector<1x8x8xf32> to vector<8x8xf32>
    %91 = vector.extract_strided_slice %84 {offsets = [3, 0, 0], sizes = [1, 8, 8], strides = [1, 1, 1]} : vector<4x8x8xf32> to vector<1x8x8xf32>
    %92 = vector.shape_cast %91 : vector<1x8x8xf32> to vector<8x8xf32>
    %93 = tpu.concatenate %86, %88, %90, %92 in 1 : vector<8x8xf32>, vector<8x8xf32>, vector<8x8xf32>, vector<8x8xf32> -> vector<8x32xf32>
    %94 = arith.addf %1, %93 : vector<8x32xf32>
    %c0_29 = arith.constant 0 : index
    %c0_30 = arith.constant 0 : index
    %95 = vector.load %arg10[%c0_29, %c0_30] : memref<1x32xf32, #tpu.memory_space<vmem>>, vector<1x32xf32>
    %c0_31 = arith.constant 0 : index
    %c0_32 = arith.constant 0 : index
    %96 = vector.load %arg11[%c0_31, %c0_32] : memref<1x32xf32, #tpu.memory_space<vmem>>, vector<1x32xf32>
    %cst_33 = arith.constant dense<0.000000e+00> : vector<8xf32>
    %97 = vector.multi_reduction <add>, %94, %cst_33 [1] : vector<8x32xf32> to vector<8xf32>
    %98 = vector.shape_cast %97 : vector<8xf32> to vector<8x1xf32>
    %cst_34 = arith.constant 3.200000e+01 : f32
    %99 = vector.broadcast %cst_34 : f32 to vector<8x1xf32>
    %100 = arith.divf %98, %99 : vector<8x1xf32>
    %101 = vector.broadcast %100 : vector<8x1xf32> to vector<8x32xf32>
    %102 = arith.subf %94, %101 : vector<8x32xf32>
    %103 = arith.mulf %102, %102 : vector<8x32xf32>
    %cst_35 = arith.constant dense<0.000000e+00> : vector<8xf32>
    %104 = vector.multi_reduction <add>, %103, %cst_35 [1] : vector<8x32xf32> to vector<8xf32>
    %105 = vector.shape_cast %104 : vector<8xf32> to vector<8x1xf32>
    %cst_36 = arith.constant 3.200000e+01 : f32
    %106 = vector.broadcast %cst_36 : f32 to vector<8x1xf32>
    %107 = arith.divf %105, %106 : vector<8x1xf32>
    %108 = vector.broadcast %100 : vector<8x1xf32> to vector<8x32xf32>
    %109 = arith.subf %94, %108 : vector<8x32xf32>
    %cst_37 = arith.constant 9.99999974E-6 : f32
    %110 = vector.broadcast %cst_37 : f32 to vector<8x1xf32>
    %111 = arith.addf %107, %110 : vector<8x1xf32>
    %112 = math.rsqrt %111 : vector<8x1xf32>
    %113 = vector.broadcast %112 : vector<8x1xf32> to vector<8x32xf32>
    %114 = arith.mulf %109, %113 : vector<8x32xf32>
    %115 = vector.broadcast %95 : vector<1x32xf32> to vector<8x32xf32>
    %116 = arith.mulf %114, %115 : vector<8x32xf32>
    %117 = vector.broadcast %96 : vector<1x32xf32> to vector<8x32xf32>
    %118 = arith.addf %116, %117 : vector<8x32xf32>
    %119 = arith.truncf %118 : vector<8x32xf32> to vector<8x32xbf16>
    %c0_38 = arith.constant 0 : index
    %c0_39 = arith.constant 0 : index
    %120 = vector.load %arg12[%c0_38, %c0_39] : memref<32x64xbf16, #tpu.memory_space<vmem>>, vector<32x64xbf16>
    %cst_40 = arith.constant dense<0.000000e+00> : vector<8x64xf32>
    %121 = tpu.matmul %119, %120, %cst_40 {dimension_numbers = #tpu.dot_dimension_numbers<[1], [0], [0], [1], [0, 0, 1, 1], [], []>} : vector<8x32xbf16>, vector<32x64xbf16>, vector<8x64xf32> -> vector<8x64xf32>
    %c0_41 = arith.constant 0 : index
    %c0_42 = arith.constant 0 : index
    %122 = vector.load %arg13[%c0_41, %c0_42] : memref<1x64xf32, #tpu.memory_space<vmem>>, vector<1x64xf32>
    %123 = vector.broadcast %122 : vector<1x64xf32> to vector<8x64xf32>
    %124 = arith.addf %121, %123 : vector<8x64xf32>
    %cst_43 = arith.constant 5.000000e-01 : f32
    %125 = vector.broadcast %cst_43 : f32 to vector<8x64xf32>
    %126 = arith.mulf %125, %124 : vector<8x64xf32>
    %cst_44 = arith.constant 4.471500e-02 : f32
    %127 = vector.broadcast %cst_44 : f32 to vector<8x64xf32>
    %128 = arith.mulf %127, %124 : vector<8x64xf32>
    %129 = arith.mulf %128, %124 : vector<8x64xf32>
    %130 = arith.mulf %129, %124 : vector<8x64xf32>
    %131 = arith.addf %124, %130 : vector<8x64xf32>
    %cst_45 = arith.constant 0.797884583 : f32
    %132 = vector.broadcast %cst_45 : f32 to vector<8x64xf32>
    %133 = arith.mulf %132, %131 : vector<8x64xf32>
    %134 = math.tanh %133 : vector<8x64xf32>
    %cst_46 = arith.constant 1.000000e+00 : f32
    %135 = vector.broadcast %cst_46 : f32 to vector<8x64xf32>
    %136 = arith.addf %135, %134 : vector<8x64xf32>
    %137 = arith.mulf %126, %136 : vector<8x64xf32>
    %138 = arith.truncf %137 : vector<8x64xf32> to vector<8x64xbf16>
    %c0_47 = arith.constant 0 : index
    %c0_48 = arith.constant 0 : index
    %139 = vector.load %arg14[%c0_47, %c0_48] : memref<64x32xbf16, #tpu.memory_space<vmem>>, vector<64x32xbf16>
    %cst_49 = arith.constant dense<0.000000e+00> : vector<8x32xf32>
    %140 = tpu.matmul %138, %139, %cst_49 {dimension_numbers = #tpu.dot_dimension_numbers<[1], [0], [0], [1], [0, 0, 1, 1], [], []>} : vector<8x64xbf16>, vector<64x32xbf16>, vector<8x32xf32> -> vector<8x32xf32>
    %c0_50 = arith.constant 0 : index
    %c0_51 = arith.constant 0 : index
    %141 = vector.load %arg15[%c0_50, %c0_51] : memref<1x32xf32, #tpu.memory_space<vmem>>, vector<1x32xf32>
    %142 = vector.broadcast %141 : vector<1x32xf32> to vector<8x32xf32>
    %143 = arith.addf %140, %142 : vector<8x32xf32>
    %144 = arith.addf %94, %143 : vector<8x32xf32>
    %c0_52 = arith.constant 0 : index
    %c0_53 = arith.constant 0 : index
    %c0_54 = arith.constant 0 : index
    %145 = vector.load %arg16[%c0_52, %c0_53, %c0_54] : memref<1x8x32xf32, #tpu.memory_space<vmem>>, vector<1x8x32xf32>
    %146 = vector.shape_cast %145 : vector<1x8x32xf32> to vector<8x32xf32>
    %147 = vector.shape_cast %144 : vector<8x32xf32> to vector<1x8x32xf32>
    tpu.vector_store %arg16[%c0_52, %c0_53, %c0_54], %147 {strides = array<i32>} : memref<1x8x32xf32, #tpu.memory_space<vmem>>, vector<1x8x32xf32>,
    return
  }
  func.func @transform_0(%arg0: i32) -> (i32, i32, i32) {
    %c0_i32 = arith.constant 0 : i32
    %c0_i32_0 = arith.constant 0 : i32
    %c0_i32_1 = arith.constant 0 : i32
    return %arg0, %c0_i32, %c0_i32_0 : i32, i32, i32
  }
  func.func @transform_1(%arg0: i32) -> (i32, i32) {
    %c0_i32 = arith.constant 0 : i32
    %c0_i32_0 = arith.constant 0 : i32
    %c0_i32_1 = arith.constant 0 : i32
    return %c0_i32, %c0_i32_0 : i32, i32
  }
  func.func @transform_2(%arg0: i32) -> (i32, i32) {
    %c0_i32 = arith.constant 0 : i32
    %c0_i32_0 = arith.constant 0 : i32
    %c0_i32_1 = arith.constant 0 : i32
    return %c0_i32, %c0_i32_0 : i32, i32
  }
  func.func @transform_3(%arg0: i32) -> (i32, i32) {
    %c0_i32 = arith.constant 0 : i32
    %c0_i32_0 = arith.constant 0 : i32
    %c0_i32_1 = arith.constant 0 : i32
    return %c0_i32, %c0_i32_0 : i32, i32
  }
  func.func @transform_4(%arg0: i32) -> (i32, i32) {
    %c0_i32 = arith.constant 0 : i32
    %c0_i32_0 = arith.constant 0 : i32
    %c0_i32_1 = arith.constant 0 : i32
    return %c0_i32, %c0_i32_0 : i32, i32
  }
  func.func @transform_5(%arg0: i32) -> (i32, i32) {
    %c0_i32 = arith.constant 0 : i32
    %c0_i32_0 = arith.constant 0 : i32
    %c0_i32_1 = arith.constant 0 : i32
    return %c0_i32, %c0_i32_0 : i32, i32
  }
  func.func @transform_6(%arg0: i32) -> (i32, i32) {
    %c0_i32 = arith.constant 0 : i32
    %c0_i32_0 = arith.constant 0 : i32
    %c0_i32_1 = arith.constant 0 : i32
    return %c0_i32, %c0_i32_0 : i32, i32
  }
  func.func @transform_7(%arg0: i32) -> (i32, i32) {
    %c0_i32 = arith.constant 0 : i32
    %c0_i32_0 = arith.constant 0 : i32
    %c0_i32_1 = arith.constant 0 : i32
    return %c0_i32, %c0_i32_0 : i32, i32
  }
  func.func @transform_8(%arg0: i32) -> (i32, i32) {
    %c0_i32 = arith.constant 0 : i32
    %c0_i32_0 = arith.constant 0 : i32
    %c0_i32_1 = arith.constant 0 : i32
    return %c0_i32, %c0_i32_0 : i32, i32
  }
  func.func @transform_9(%arg0: i32) -> (i32, i32) {
    %c0_i32 = arith.constant 0 : i32
    %c0_i32_0 = arith.constant 0 : i32
    %c0_i32_1 = arith.constant 0 : i32
    return %c0_i32, %c0_i32_0 : i32, i32
  }
  func.func @transform_10(%arg0: i32) -> (i32, i32) {
    %c0_i32 = arith.constant 0 : i32
    %c0_i32_0 = arith.constant 0 : i32
    %c0_i32_1 = arith.constant 0 : i32
    return %c0_i32, %c0_i32_0 : i32, i32
  }
  func.func @transform_11(%arg0: i32) -> (i32, i32) {
    %c0_i32 = arith.constant 0 : i32
    %c0_i32_0 = arith.constant 0 : i32
    %c0_i32_1 = arith.constant 0 : i32
    return %c0_i32, %c0_i32_0 : i32, i32
  }
  func.func @transform_12(%arg0: i32) -> (i32, i32) {
    %c0_i32 = arith.constant 0 : i32
    %c0_i32_0 = arith.constant 0 : i32
    %c0_i32_1 = arith.constant 0 : i32
    return %c0_i32, %c0_i32_0 : i32, i32
  }
  func.func @transform_13(%arg0: i32) -> (i32, i32) {
    %c0_i32 = arith.constant 0 : i32
    %c0_i32_0 = arith.constant 0 : i32
    %c0_i32_1 = arith.constant 0 : i32
    return %c0_i32, %c0_i32_0 : i32, i32
  }
  func.func @transform_14(%arg0: i32) -> (i32, i32) {
    %c0_i32 = arith.constant 0 : i32
    %c0_i32_0 = arith.constant 0 : i32
    %c0_i32_1 = arith.constant 0 : i32
    return %c0_i32, %c0_i32_0 : i32, i32
  }
  func.func @transform_15(%arg0: i32) -> (i32, i32, i32) {
    %c0_i32 = arith.constant 0 : i32
    %c0_i32_0 = arith.constant 0 : i32
    %c0_i32_1 = arith.constant 0 : i32
    return %arg0, %c0_i32, %c0_i32_0 : i32, i32, i32
  }
}

</mosaic_0001>

<llo_original>
// kernel: tpu_custom_call.1
$region0: #{tpu_custom_call.1}
  #allocation0 [shape = 'u32[]', space=smem, size = 0x4, offset = 0x4, fixed_abs, tag = 'smem constant byte address 0x4 - core index']
  #allocation1 [shape = 'u32[144,128]{1,0:T(1,128)}', space=vmem, size = 0x12000, scoped, tag = 'internal scratch']
  %s0 = inlined_call_operand.hbm [shape: f32[2,8,32], index: 0, kind: input, shape index: {}]
  %s1 = inlined_call_operand.hbm [shape: f32[1,32], index: 1, kind: input, shape index: {}]
  %s2 = inlined_call_operand.hbm [shape: f32[1,32], index: 2, kind: input, shape index: {}]
  %s3 = inlined_call_operand.hbm [shape: bf16[32,32], index: 3, kind: input, shape index: {}]
  %s4 = inlined_call_operand.hbm [shape: f32[1,32], index: 4, kind: input, shape index: {}]
  %s5 = inlined_call_operand.hbm [shape: bf16[32,32], index: 5, kind: input, shape index: {}]
  %s6 = inlined_call_operand.hbm [shape: f32[1,32], index: 6, kind: input, shape index: {}]
  %s7 = inlined_call_operand.hbm [shape: bf16[32,32], index: 7, kind: input, shape index: {}]
  %s8 = inlined_call_operand.hbm [shape: f32[1,32], index: 8, kind: input, shape index: {}]
  %s9 = inlined_call_operand.hbm [shape: f32[1,32], index: 9, kind: input, shape index: {}]
  %s10 = inlined_call_operand.hbm [shape: f32[1,32], index: 10, kind: input, shape index: {}]
  %s11 = inlined_call_operand.hbm [shape: bf16[32,64], index: 11, kind: input, shape index: {}]
  %s12 = inlined_call_operand.hbm [shape: f32[1,64], index: 12, kind: input, shape index: {}]
  %s13 = inlined_call_operand.hbm [shape: bf16[64,32], index: 13, kind: input, shape index: {}]
  %s14 = inlined_call_operand.hbm [shape: f32[1,32], index: 14, kind: input, shape index: {}]
  %s15 = inlined_call_operand.hbm [shape: f32[2,8,32], index: 15, kind: output, shape index: {}]
  %s16 = sld [smem:[#allocation0]]
  $region153: #{tpu_custom_call.1} parent=0
    _
  %s18 = ssub.s32 1, %s16
  %s19 = scalar_select 0, %s18, %s16
  $region1: #{tpu_custom_call.1} parent=0
    #allocation2 [shape = 'u8[8192]{0}', space=vmem, size = 0x2000, scoped, tag = 'input window, operand 0']
    #allocation3 [shape = 's32[2]{0}', space=sflag, size = 0x8, scoped, tag = 'scoped memory for tpu_custom_call.1']
    #allocation4 [shape = 's32[2]{0}', space=sflag, size = 0x8, scoped, tag = 'scoped memory for tpu_custom_call.1']
    #allocation5 [shape = 'u8[512]{0}', space=vmem, size = 0x400, scoped, tag = 'input window, operand 1, single buffered']
    #allocation6 [shape = 's32[1]{0}', space=sflag, size = 0x4, scoped, tag = 'scoped memory for tpu_custom_call.1']
    #allocation7 [shape = 'u8[512]{0}', space=vmem, size = 0x400, scoped, tag = 'input window, operand 2, single buffered']
    #allocation8 [shape = 'u8[8192]{0}', space=vmem, size = 0x2000, scoped, tag = 'input window, operand 3, single buffered']
    #allocation9 [shape = 's32[1]{0}', space=sflag, size = 0x4, scoped, tag = 'scoped memory for tpu_custom_call.1']
    #allocation10 [shape = 'u8[512]{0}', space=vmem, size = 0x400, scoped, tag = 'input window, operand 4, single buffered']
    #allocation11 [shape = 'u8[8192]{0}', space=vmem, size = 0x2000, scoped, tag = 'input window, operand 5, single buffered']
    #allocation12 [shape = 's32[1]{0}', space=sflag, size = 0x4, scoped, tag = 'scoped memory for tpu_custom_call.1']
    #allocation13 [shape = 'u8[512]{0}', space=vmem, size = 0x400, scoped, tag = 'input window, operand 6, single buffered']
    #allocation14 [shape = 'u8[8192]{0}', space=vmem, size = 0x2000, scoped, tag = 'input window, operand 7, single buffered']
    #allocation15 [shape = 's32[1]{0}', space=sflag, size = 0x4, scoped, tag = 'scoped memory for tpu_custom_call.1']
    #allocation16 [shape = 'u8[512]{0}', space=vmem, size = 0x400, scoped, tag = 'input window, operand 8, single buffered']
    #allocation17 [shape = 'u8[512]{0}', space=vmem, size = 0x400, scoped, tag = 'input window, operand 9, single buffered']
    #allocation18 [shape = 's32[1]{0}', space=sflag, size = 0x4, scoped, tag = 'scoped memory for tpu_custom_call.1']
    #allocation19 [shape = 'u8[512]{0}', space=vmem, size = 0x400, scoped, tag = 'input window, operand 10, single buffered']
    #allocation20 [shape = 'u8[8192]{0}', space=vmem, size = 0x2000, scoped, tag = 'input window, operand 11, single buffered']
    #allocation21 [shape = 's32[1]{0}', space=sflag, size = 0x4, scoped, tag = 'scoped memory for tpu_custom_call.1']
    #allocation22 [shape = 'u8[512]{0}', space=vmem, size = 0x400, scoped, tag = 'input window, operand 12, single buffered']
    #allocation23 [shape = 'u8[16384]{0}', space=vmem, size = 0x4000, scoped, tag = 'input window, operand 13, single buffered']
    #allocation24 [shape = 's32[1]{0}', space=sflag, size = 0x4, scoped, tag = 'scoped memory for tpu_custom_call.1']
    #allocation25 [shape = 'u8[512]{0}', space=vmem, size = 0x400, scoped, tag = 'input window, operand 14, single buffered']
    #allocation26 [shape = 'u8[8192]{0}', space=vmem, size = 0x2000, scoped, tag = 'output window, operand 0']
    %20 = vsyncpa [#allocation3], 0
    %s21 = scalar_lea.sflag [#allocation3], 1
    %22 = vsyncpa %s21, 0
    %23 = vsyncpa [#allocation6], 0
    %24 = vsyncpa [#allocation9], 0
    %25 = vsyncpa [#allocation12], 0
    %26 = vsyncpa [#allocation15], 0
    %27 = vsyncpa [#allocation18], 0
    %28 = vsyncpa [#allocation21], 0
    %29 = vsyncpa [#allocation24], 0
    %30 = vsyncpa [#allocation4], 0
    %s31 = scalar_lea.sflag [#allocation4], 1
    %32 = vsyncpa %s31, 0
    loop: start=0, step=1, limit=4
    $region2: #{tpu_custom_call.1} parent=1 // loop_pre_header
      _
    $region3: #{tpu_custom_call.1} parent=1 // loop_header
      %s34 = sphi 0, %s38
      %p35 = scmp.ge.s32.totalorder %s34, 4
      %s44 = sphi 0, %s46
      %s47 = sphi 0, %s44
      %s48 = sphi 0, %s47
      %s64 = sphi 0, %s48
      %s68 = sphi 0, %s68
      %s70 = sphi 0, %s68
      %s71 = sphi 0, %s70
      %s85 = sphi 0, %s71
      %s89 = sphi 0, %s89
      %s91 = sphi 0, %s89
      %s92 = sphi 0, %s91
      %s106 = sphi 0, %s92
      %s110 = sphi 0, %s110
      %s112 = sphi 0, %s110
      %s113 = sphi 0, %s112
      %s127 = sphi 0, %s113
      %s131 = sphi 0, %s131
      %s133 = sphi 0, %s131
      %s134 = sphi 0, %s133
      %s148 = sphi 0, %s134
      %s152 = sphi 0, %s152
      %s154 = sphi 0, %s152
      %s155 = sphi 0, %s154
      %s169 = sphi 0, %s155
      %s173 = sphi 0, %s173
      %s175 = sphi 0, %s173
      %s176 = sphi 0, %s175
      %s190 = sphi 0, %s176
      %s194 = sphi 0, %s194
      %s196 = sphi 0, %s194
      %s197 = sphi 0, %s196
      %s211 = sphi 0, %s197
      %s215 = sphi 0, %s215
      %s217 = sphi 0, %s215
      %s218 = sphi 0, %s217
      %s232 = sphi 0, %s218
      %s236 = sphi 0, %s236
      %s238 = sphi 0, %s236
      %s239 = sphi 0, %s238
      %s253 = sphi 0, %s239
      %s257 = sphi 0, %s257
      %s259 = sphi 0, %s257
      %s260 = sphi 0, %s259
      %s274 = sphi 0, %s260
      %s278 = sphi 0, %s278
      %s280 = sphi 0, %s278
      %s281 = sphi 0, %s280
      %s295 = sphi 0, %s281
      %s299 = sphi 0, %s299
      %s301 = sphi 0, %s299
      %s302 = sphi 0, %s301
      %s316 = sphi 0, %s302
      %s320 = sphi 0, %s320
      %s322 = sphi 0, %s320
      %s323 = sphi 0, %s322
      %s337 = sphi 0, %s323
      %s341 = sphi 0, %s341
      %s343 = sphi 0, %s341
      %s344 = sphi 0, %s343
      %s358 = sphi 0, %s344
      %s364 = sphi 0, %s366
      %s367 = sphi 0, %s364
      %s368 = sphi 0, %s367
      %s384 = sphi 0, %s368
    $region4: #{tpu_custom_call.1} parent=1 // loop_header_branch
      %37 = sbr.rel (%p35) target = $region8
    $region5: #{tpu_custom_call.1} parent=1 // loop_body
      %s39 = ssub.s32 %s34, 1
      %s40 = ssub.s32 %s34, 2
      %s41 = sadd.s32 %s34, 1
      %s42 = ssub.s32 %s34, %s41
      %p43 = scmp.eq.s32.totalorder %s42, 0
      %s45 = sadd.s32 %s44, 1
      %s46 = scalar_select %p43, %s44, %s45
      %p49 = pneg %p43
      %p50 = scmp.eq.s32.totalorder %s34, 1
      %p51 = por %p49, %p50
      %p52 = scmp.ne.s32.totalorder %s44, %s47
      %p53 = scmp.eq.s32.totalorder %s34, 0
      %p54 = por %p52, %p53
      %p55 = scmp.ne.s32.totalorder %s44, %s47
      %p56 = scmp.eq.s32.totalorder %s39, 1
      %p57 = por %p55, %p56
      %p58 = scmp.ne.s32.totalorder %s47, %s48
      %p59 = scmp.eq.s32.totalorder %s39, 0
      %p60 = por %p58, %p59
      %p61 = scmp.ne.s32.totalorder %s47, %s48
      %p62 = scmp.eq.s32.totalorder %s40, 1
      %p63 = por %p61, %p62
      %p65 = scmp.ne.s32.totalorder %s48, %s64
      %p66 = scmp.eq.s32.totalorder %s40, 0
      %p67 = por %p65, %p66
      %s69 = sadd.s32 %s68, 1
      %p72 = scmp.eq.s32.totalorder %s34, 1
      %p73 = scmp.ne.s32.totalorder %s68, %s70
      %p74 = scmp.eq.s32.totalorder %s34, 0
      %p75 = por %p73, %p74
      %p76 = scmp.ne.s32.totalorder %s68, %s70
      %p77 = scmp.eq.s32.totalorder %s39, 1
      %p78 = por %p76, %p77
      %p79 = scmp.ne.s32.totalorder %s70, %s71
      %p80 = scmp.eq.s32.totalorder %s39, 0
      %p81 = por %p79, %p80
      %p82 = scmp.ne.s32.totalorder %s70, %s71
      %p83 = scmp.eq.s32.totalorder %s40, 1
      %p84 = por %p82, %p83
      %p86 = scmp.ne.s32.totalorder %s71, %s85
      %p87 = scmp.eq.s32.totalorder %s40, 0
      %p88 = por %p86, %p87
      %s90 = sadd.s32 %s89, 1
      %p93 = scmp.eq.s32.totalorder %s34, 1
      %p94 = scmp.ne.s32.totalorder %s89, %s91
      %p95 = scmp.eq.s32.totalorder %s34, 0
      %p96 = por %p94, %p95
      %p97 = scmp.ne.s32.totalorder %s89, %s91
      %p98 = scmp.eq.s32.totalorder %s39, 1
      %p99 = por %p97, %p98
      %p100 = scmp.ne.s32.totalorder %s91, %s92
      %p101 = scmp.eq.s32.totalorder %s39, 0
      %p102 = por %p100, %p101
      %p103 = scmp.ne.s32.totalorder %s91, %s92
      %p104 = scmp.eq.s32.totalorder %s40, 1
      %p105 = por %p103, %p104
      %p107 = scmp.ne.s32.totalorder %s92, %s106
      %p108 = scmp.eq.s32.totalorder %s40, 0
      %p109 = por %p107, %p108
      %s111 = sadd.s32 %s110, 1
      %p114 = scmp.eq.s32.totalorder %s34, 1
      %p115 = scmp.ne.s32.totalorder %s110, %s112
      %p116 = scmp.eq.s32.totalorder %s34, 0
      %p117 = por %p115, %p116
      %p118 = scmp.ne.s32.totalorder %s110, %s112
      %p119 = scmp.eq.s32.totalorder %s39, 1
      %p120 = por %p118, %p119
      %p121 = scmp.ne.s32.totalorder %s112, %s113
      %p122 = scmp.eq.s32.totalorder %s39, 0
      %p123 = por %p121, %p122
      %p124 = scmp.ne.s32.totalorder %s112, %s113
      %p125 = scmp.eq.s32.totalorder %s40, 1
      %p126 = por %p124, %p125
      %p128 = scmp.ne.s32.totalorder %s113, %s127
      %p129 = scmp.eq.s32.totalorder %s40, 0
      %p130 = por %p128, %p129
      %s132 = sadd.s32 %s131, 1
      %p135 = scmp.eq.s32.totalorder %s34, 1
      %p136 = scmp.ne.s32.totalorder %s131, %s133
      %p137 = scmp.eq.s32.totalorder %s34, 0
      %p138 = por %p136, %p137
      %p139 = scmp.ne.s32.totalorder %s131, %s133
      %p140 = scmp.eq.s32.totalorder %s39, 1
      %p141 = por %p139, %p140
      %p142 = scmp.ne.s32.totalorder %s133, %s134
      %p143 = scmp.eq.s32.totalorder %s39, 0
      %p144 = por %p142, %p143
      %p145 = scmp.ne.s32.totalorder %s133, %s134
      %p146 = scmp.eq.s32.totalorder %s40, 1
      %p147 = por %p145, %p146
      %p149 = scmp.ne.s32.totalorder %s134, %s148
      %p150 = scmp.eq.s32.totalorder %s40, 0
      %p151 = por %p149, %p150
      %s153 = sadd.s32 %s152, 1
      %p156 = scmp.eq.s32.totalorder %s34, 1
      %p157 = scmp.ne.s32.totalorder %s152, %s154
      %p158 = scmp.eq.s32.totalorder %s34, 0
      %p159 = por %p157, %p158
      %p160 = scmp.ne.s32.totalorder %s152, %s154
      %p161 = scmp.eq.s32.totalorder %s39, 1
      %p162 = por %p160, %p161
      %p163 = scmp.ne.s32.totalorder %s154, %s155
      %p164 = scmp.eq.s32.totalorder %s39, 0
      %p165 = por %p163, %p164
      %p166 = scmp.ne.s32.totalorder %s154, %s155
      %p167 = scmp.eq.s32.totalorder %s40, 1
      %p168 = por %p166, %p167
      %p170 = scmp.ne.s32.totalorder %s155, %s169
      %p171 = scmp.eq.s32.totalorder %s40, 0
      %p172 = por %p170, %p171
      %s174 = sadd.s32 %s173, 1
      %p177 = scmp.eq.s32.totalorder %s34, 1
      %p178 = scmp.ne.s32.totalorder %s173, %s175
      %p179 = scmp.eq.s32.totalorder %s34, 0
      %p180 = por %p178, %p179
      %p181 = scmp.ne.s32.totalorder %s173, %s175
      %p182 = scmp.eq.s32.totalorder %s39, 1
      %p183 = por %p181, %p182
      %p184 = scmp.ne.s32.totalorder %s175, %s176
      %p185 = scmp.eq.s32.totalorder %s39, 0
      %p186 = por %p184, %p185
      %p187 = scmp.ne.s32.totalorder %s175, %s176
      %p188 = scmp.eq.s32.totalorder %s40, 1
      %p189 = por %p187, %p188
      %p191 = scmp.ne.s32.totalorder %s176, %s190
      %p192 = scmp.eq.s32.totalorder %s40, 0
      %p193 = por %p191, %p192
      %s195 = sadd.s32 %s194, 1
      %p198 = scmp.eq.s32.totalorder %s34, 1
      %p199 = scmp.ne.s32.totalorder %s194, %s196
      %p200 = scmp.eq.s32.totalorder %s34, 0
      %p201 = por %p199, %p200
      %p202 = scmp.ne.s32.totalorder %s194, %s196
      %p203 = scmp.eq.s32.totalorder %s39, 1
      %p204 = por %p202, %p203
      %p205 = scmp.ne.s32.totalorder %s196, %s197
      %p206 = scmp.eq.s32.totalorder %s39, 0
      %p207 = por %p205, %p206
      %p208 = scmp.ne.s32.totalorder %s196, %s197
      %p209 = scmp.eq.s32.totalorder %s40, 1
      %p210 = por %p208, %p209
      %p212 = scmp.ne.s32.totalorder %s197, %s211
      %p213 = scmp.eq.s32.totalorder %s40, 0
      %p214 = por %p212, %p213
      %s216 = sadd.s32 %s215, 1
      %p219 = scmp.eq.s32.totalorder %s34, 1
      %p220 = scmp.ne.s32.totalorder %s215, %s217
      %p221 = scmp.eq.s32.totalorder %s34, 0
      %p222 = por %p220, %p221
      %p223 = scmp.ne.s32.totalorder %s215, %s217
      %p224 = scmp.eq.s32.totalorder %s39, 1
      %p225 = por %p223, %p224
      %p226 = scmp.ne.s32.totalorder %s217, %s218
      %p227 = scmp.eq.s32.totalorder %s39, 0
      %p228 = por %p226, %p227
      %p229 = scmp.ne.s32.totalorder %s217, %s218
      %p230 = scmp.eq.s32.totalorder %s40, 1
      %p231 = por %p229, %p230
      %p233 = scmp.ne.s32.totalorder %s218, %s232
      %p234 = scmp.eq.s32.totalorder %s40, 0
      %p235 = por %p233, %p234
      %s237 = sadd.s32 %s236, 1
      %p240 = scmp.eq.s32.totalorder %s34, 1
      %p241 = scmp.ne.s32.totalorder %s236, %s238
      %p242 = scmp.eq.s32.totalorder %s34, 0
      %p243 = por %p241, %p242
      %p244 = scmp.ne.s32.totalorder %s236, %s238
      %p245 = scmp.eq.s32.totalorder %s39, 1
      %p246 = por %p244, %p245
      %p247 = scmp.ne.s32.totalorder %s238, %s239
      %p248 = scmp.eq.s32.totalorder %s39, 0
      %p249 = por %p247, %p248
      %p250 = scmp.ne.s32.totalorder %s238, %s239
      %p251 = scmp.eq.s32.totalorder %s40, 1
      %p252 = por %p250, %p251
      %p254 = scmp.ne.s32.totalorder %s239, %s253
      %p255 = scmp.eq.s32.totalorder %s40, 0
      %p256 = por %p254, %p255
      %s258 = sadd.s32 %s257, 1
      %p261 = scmp.eq.s32.totalorder %s34, 1
      %p262 = scmp.ne.s32.totalorder %s257, %s259
      %p263 = scmp.eq.s32.totalorder %s34, 0
      %p264 = por %p262, %p263
      %p265 = scmp.ne.s32.totalorder %s257, %s259
      %p266 = scmp.eq.s32.totalorder %s39, 1
      %p267 = por %p265, %p266
      %p268 = scmp.ne.s32.totalorder %s259, %s260
      %p269 = scmp.eq.s32.totalorder %s39, 0
      %p270 = por %p268, %p269
      %p271 = scmp.ne.s32.totalorder %s259, %s260
      %p272 = scmp.eq.s32.totalorder %s40, 1
      %p273 = por %p271, %p272
      %p275 = scmp.ne.s32.totalorder %s260, %s274
      %p276 = scmp.eq.s32.totalorder %s40, 0
      %p277 = por %p275, %p276
      %s279 = sadd.s32 %s278, 1
      %p282 = scmp.eq.s32.totalorder %s34, 1
      %p283 = scmp.ne.s32.totalorder %s278, %s280
      %p284 = scmp.eq.s32.totalorder %s34, 0
      %p285 = por %p283, %p284
      %p286 = scmp.ne.s32.totalorder %s278, %s280
      %p287 = scmp.eq.s32.totalorder %s39, 1
      %p288 = por %p286, %p287
      %p289 = scmp.ne.s32.totalorder %s280, %s281
      %p290 = scmp.eq.s32.totalorder %s39, 0
      %p291 = por %p289, %p290
      %p292 = scmp.ne.s32.totalorder %s280, %s281
      %p293 = scmp.eq.s32.totalorder %s40, 1
      %p294 = por %p292, %p293
      %p296 = scmp.ne.s32.totalorder %s281, %s295
      %p297 = scmp.eq.s32.totalorder %s40, 0
      %p298 = por %p296, %p297
      %s300 = sadd.s32 %s299, 1
      %p303 = scmp.eq.s32.totalorder %s34, 1
      %p304 = scmp.ne.s32.totalorder %s299, %s301
      %p305 = scmp.eq.s32.totalorder %s34, 0
      %p306 = por %p304, %p305
      %p307 = scmp.ne.s32.totalorder %s299, %s301
      %p308 = scmp.eq.s32.totalorder %s39, 1
      %p309 = por %p307, %p308
      %p310 = scmp.ne.s32.totalorder %s301, %s302
      %p311 = scmp.eq.s32.totalorder %s39, 0
      %p312 = por %p310, %p311
      %p313 = scmp.ne.s32.totalorder %s301, %s302
      %p314 = scmp.eq.s32.totalorder %s40, 1
      %p315 = por %p313, %p314
      %p317 = scmp.ne.s32.totalorder %s302, %s316
      %p318 = scmp.eq.s32.totalorder %s40, 0
      %p319 = por %p317, %p318
      %s321 = sadd.s32 %s320, 1
      %p324 = scmp.eq.s32.totalorder %s34, 1
      %p325 = scmp.ne.s32.totalorder %s320, %s322
      %p326 = scmp.eq.s32.totalorder %s34, 0
      %p327 = por %p325, %p326
      %p328 = scmp.ne.s32.totalorder %s320, %s322
      %p329 = scmp.eq.s32.totalorder %s39, 1
      %p330 = por %p328, %p329
      %p331 = scmp.ne.s32.totalorder %s322, %s323
      %p332 = scmp.eq.s32.totalorder %s39, 0
      %p333 = por %p331, %p332
      %p334 = scmp.ne.s32.totalorder %s322, %s323
      %p335 = scmp.eq.s32.totalorder %s40, 1
      %p336 = por %p334, %p335
      %p338 = scmp.ne.s32.totalorder %s323, %s337
      %p339 = scmp.eq.s32.totalorder %s40, 0
      %p340 = por %p338, %p339
      %s342 = sadd.s32 %s341, 1
      %p345 = scmp.eq.s32.totalorder %s34, 1
      %p346 = scmp.ne.s32.totalorder %s341, %s343
      %p347 = scmp.eq.s32.totalorder %s34, 0
      %p348 = por %p346, %p347
      %p349 = scmp.ne.s32.totalorder %s341, %s343
      %p350 = scmp.eq.s32.totalorder %s39, 1
      %p351 = por %p349, %p350
      %p352 = scmp.ne.s32.totalorder %s343, %s344
      %p353 = scmp.eq.s32.totalorder %s39, 0
      %p354 = por %p352, %p353
      %p355 = scmp.ne.s32.totalorder %s343, %s344
      %p356 = scmp.eq.s32.totalorder %s40, 1
      %p357 = por %p355, %p356
      %p359 = scmp.ne.s32.totalorder %s344, %s358
      %p360 = scmp.eq.s32.totalorder %s40, 0
      %p361 = por %p359, %p360
      %s362 = ssub.s32 %s34, %s41
      %p363 = scmp.eq.s32.totalorder %s362, 0
      %s365 = sadd.s32 %s364, 1
      %s366 = scalar_select %p363, %s364, %s365
      %p369 = pneg %p363
      %p370 = scmp.eq.s32.totalorder %s34, 1
      %p371 = por %p369, %p370
      %p372 = scmp.ne.s32.totalorder %s364, %s367
      %p373 = scmp.eq.s32.totalorder %s34, 0
      %p374 = por %p372, %p373
      %p375 = scmp.ne.s32.totalorder %s364, %s367
      %p376 = scmp.eq.s32.totalorder %s39, 1
      %p377 = por %p375, %p376
      %p378 = scmp.ne.s32.totalorder %s367, %s368
      %p379 = scmp.eq.s32.totalorder %s39, 0
      %p380 = por %p378, %p379
      %p381 = scmp.ne.s32.totalorder %s367, %s368
      %p382 = scmp.eq.s32.totalorder %s40, 1
      %p383 = por %p381, %p382
      %p385 = scmp.ne.s32.totalorder %s368, %s384
      %p386 = scmp.eq.s32.totalorder %s40, 0
      %p387 = por %p385, %p386
      %p388 = scmp.le.s32.totalorder 1, %s34
      %p389 = scmp.lt.s32.totalorder %s34, 3
      %p390 = pnand %p388, %p389
      %p391 = pneg %p390
      // Predicated region
      $region9: #{tpu_custom_call.1} parent=5 // pred_check
        _
      $region10: #{tpu_custom_call.1} parent=5 // pred_check_branch
        %393 = sbr.rel (%p390) target = $region12
      $region11: #{tpu_custom_call.1} parent=5 // pred_region
        %s394 = ssub.s32 %s34, 1
        // Predicated region
        $region13: #{tpu_custom_call.1} parent=11 // pred_check
          %p395 = pneg %p81
        $region14: #{tpu_custom_call.1} parent=11 // pred_check_branch
          %397 = sbr.rel (%p395) target = $region16
        $region15: #{tpu_custom_call.1} parent=11 // pred_region
          %s399 = ssub.s32 16, 16
          %400 = vsyncadd [#allocation6], %s399
          %s402 = sshll.u32 [#allocation5], 4
          %s403 = int_to_ptr.vmem [resolvable:$true] %s402
          %405 = dma.hbm_to_vmem [thread:$0]  %s1, 16, %s403, [#allocation6]
        $region16: #{tpu_custom_call.1} parent=11 // pred_fallthru
          _
        // Predicated region
        $region17: #{tpu_custom_call.1} parent=11 // pred_check
          %p406 = pneg %p102
        $region18: #{tpu_custom_call.1} parent=11 // pred_check_branch
          %408 = sbr.rel (%p406) target = $region20
        $region19: #{tpu_custom_call.1} parent=11 // pred_region
          %s410 = ssub.s32 16, 16
          %411 = vsyncadd [#allocation6], %s410
          %s413 = sshll.u32 [#allocation7], 4
          %s414 = int_to_ptr.vmem [resolvable:$true] %s413
          %416 = dma.hbm_to_vmem [thread:$0]  %s2, 16, %s414, [#allocation6]
        $region20: #{tpu_custom_call.1} parent=11 // pred_fallthru
          _
        // Predicated region
        $region21: #{tpu_custom_call.1} parent=11 // pred_check
          %p417 = pneg %p123
        $region22: #{tpu_custom_call.1} parent=11 // pred_check_branch
          %419 = sbr.rel (%p417) target = $region24
        $region23: #{tpu_custom_call.1} parent=11 // pred_region
          %s421 = ssub.s32 256, 256
          %422 = vsyncadd [#allocation9], %s421
          %s423 = sshll.u32 [#allocation8], 4
          %s424 = int_to_ptr.vmem [resolvable:$true] %s423
          %429 = dma.hbm_to_vmem [thread:$0]  %s3, 256, %s424, [#allocation9], 64, 64, 4
        $region24: #{tpu_custom_call.1} parent=11 // pred_fallthru
          _
        // Predicated region
        $region25: #{tpu_custom_call.1} parent=11 // pred_check
          %p430 = pneg %p144
        $region26: #{tpu_custom_call.1} parent=11 // pred_check_branch
          %432 = sbr.rel (%p430) target = $region28
        $region27: #{tpu_custom_call.1} parent=11 // pred_region
          %s434 = ssub.s32 16, 16
          %435 = vsyncadd [#allocation9], %s434
          %s437 = sshll.u32 [#allocation10], 4
          %s438 = int_to_ptr.vmem [resolvable:$true] %s437
          %440 = dma.hbm_to_vmem [thread:$0]  %s4, 16, %s438, [#allocation9]
        $region28: #{tpu_custom_call.1} parent=11 // pred_fallthru
          _
        // Predicated region
        $region29: #{tpu_custom_call.1} parent=11 // pred_check
          %p441 = pneg %p165
        $region30: #{tpu_custom_call.1} parent=11 // pred_check_branch
          %443 = sbr.rel (%p441) target = $region32
        $region31: #{tpu_custom_call.1} parent=11 // pred_region
          %s445 = ssub.s32 256, 256
          %446 = vsyncadd [#allocation12], %s445
          %s447 = sshll.u32 [#allocation11], 4
          %s448 = int_to_ptr.vmem [resolvable:$true] %s447
          %453 = dma.hbm_to_vmem [thread:$0]  %s5, 256, %s448, [#allocation12], 64, 64, 4
        $region32: #{tpu_custom_call.1} parent=11 // pred_fallthru
          _
        // Predicated region
        $region33: #{tpu_custom_call.1} parent=11 // pred_check
          %p454 = pneg %p186
        $region34: #{tpu_custom_call.1} parent=11 // pred_check_branch
          %456 = sbr.rel (%p454) target = $region36
        $region35: #{tpu_custom_call.1} parent=11 // pred_region
          %s458 = ssub.s32 16, 16
          %459 = vsyncadd [#allocation12], %s458
          %s461 = sshll.u32 [#allocation13], 4
          %s462 = int_to_ptr.vmem [resolvable:$true] %s461
          %464 = dma.hbm_to_vmem [thread:$0]  %s6, 16, %s462, [#allocation12]
        $region36: #{tpu_custom_call.1} parent=11 // pred_fallthru
          _
        // Predicated region
        $region37: #{tpu_custom_call.1} parent=11 // pred_check
          %p465 = pneg %p207
        $region38: #{tpu_custom_call.1} parent=11 // pred_check_branch
          %467 = sbr.rel (%p465) target = $region40
        $region39: #{tpu_custom_call.1} parent=11 // pred_region
          %s469 = ssub.s32 256, 256
          %470 = vsyncadd [#allocation15], %s469
          %s471 = sshll.u32 [#allocation14], 4
          %s472 = int_to_ptr.vmem [resolvable:$true] %s471
          %477 = dma.hbm_to_vmem [thread:$0]  %s7, 256, %s472, [#allocation15], 64, 64, 4
        $region40: #{tpu_custom_call.1} parent=11 // pred_fallthru
          _
        // Predicated region
        $region41: #{tpu_custom_call.1} parent=11 // pred_check
          %p478 = pneg %p228
        $region42: #{tpu_custom_call.1} parent=11 // pred_check_branch
          %480 = sbr.rel (%p478) target = $region44
        $region43: #{tpu_custom_call.1} parent=11 // pred_region
          %s482 = ssub.s32 16, 16
          %483 = vsyncadd [#allocation15], %s482
          %s485 = sshll.u32 [#allocation16], 4
          %s486 = int_to_ptr.vmem [resolvable:$true] %s485
          %488 = dma.hbm_to_vmem [thread:$0]  %s8, 16, %s486, [#allocation15]
        $region44: #{tpu_custom_call.1} parent=11 // pred_fallthru
          _
        // Predicated region
        $region45: #{tpu_custom_call.1} parent=11 // pred_check
          %p489 = pneg %p249
        $region46: #{tpu_custom_call.1} parent=11 // pred_check_branch
          %491 = sbr.rel (%p489) target = $region48
        $region47: #{tpu_custom_call.1} parent=11 // pred_region
          %s493 = ssub.s32 16, 16
          %494 = vsyncadd [#allocation18], %s493
          %s496 = sshll.u32 [#allocation17], 4
          %s497 = int_to_ptr.vmem [resolvable:$true] %s496
          %499 = dma.hbm_to_vmem [thread:$0]  %s9, 16, %s497, [#allocation18]
        $region48: #{tpu_custom_call.1} parent=11 // pred_fallthru
          _
        // Predicated region
        $region49: #{tpu_custom_call.1} parent=11 // pred_check
          %p500 = pneg %p270
        $region50: #{tpu_custom_call.1} parent=11 // pred_check_branch
          %502 = sbr.rel (%p500) target = $region52
        $region51: #{tpu_custom_call.1} parent=11 // pred_region
          %s504 = ssub.s32 16, 16
          %505 = vsyncadd [#allocation18], %s504
          %s507 = sshll.u32 [#allocation19], 4
          %s508 = int_to_ptr.vmem [resolvable:$true] %s507
          %510 = dma.hbm_to_vmem [thread:$0]  %s10, 16, %s508, [#allocation18]
        $region52: #{tpu_custom_call.1} parent=11 // pred_fallthru
          _
        // Predicated region
        $region53: #{tpu_custom_call.1} parent=11 // pred_check
          %p511 = pneg %p291
        $region54: #{tpu_custom_call.1} parent=11 // pred_check_branch
          %513 = sbr.rel (%p511) target = $region56
        $region55: #{tpu_custom_call.1} parent=11 // pred_region
          %s515 = ssub.s32 256, 256
          %516 = vsyncadd [#allocation21], %s515
          %s517 = sshll.u32 [#allocation20], 4
          %s518 = int_to_ptr.vmem [resolvable:$true] %s517
          %523 = dma.hbm_to_vmem [thread:$0]  %s11, 256, %s518, [#allocation21], 64, 64, 4
        $region56: #{tpu_custom_call.1} parent=11 // pred_fallthru
          _
        // Predicated region
        $region57: #{tpu_custom_call.1} parent=11 // pred_check
          %p524 = pneg %p312
        $region58: #{tpu_custom_call.1} parent=11 // pred_check_branch
          %526 = sbr.rel (%p524) target = $region60
        $region59: #{tpu_custom_call.1} parent=11 // pred_region
          %s528 = ssub.s32 16, 16
          %529 = vsyncadd [#allocation21], %s528
          %s531 = sshll.u32 [#allocation22], 4
          %s532 = int_to_ptr.vmem [resolvable:$true] %s531
          %534 = dma.hbm_to_vmem [thread:$0]  %s12, 16, %s532, [#allocation21]
        $region60: #{tpu_custom_call.1} parent=11 // pred_fallthru
          _
        // Predicated region
        $region61: #{tpu_custom_call.1} parent=11 // pred_check
          %p535 = pneg %p333
        $region62: #{tpu_custom_call.1} parent=11 // pred_check_branch
          %537 = sbr.rel (%p535) target = $region64
        $region63: #{tpu_custom_call.1} parent=11 // pred_region
          %s539 = ssub.s32 512, 512
          %540 = vsyncadd [#allocation24], %s539
          %s541 = sshll.u32 [#allocation23], 4
          %s542 = int_to_ptr.vmem [resolvable:$true] %s541
          %547 = dma.hbm_to_vmem [thread:$0]  %s13, 512, %s542, [#allocation24], 64, 64, 4
        $region64: #{tpu_custom_call.1} parent=11 // pred_fallthru
          _
        // Predicated region
        $region65: #{tpu_custom_call.1} parent=11 // pred_check
          %p548 = pneg %p354
        $region66: #{tpu_custom_call.1} parent=11 // pred_check_branch
          %550 = sbr.rel (%p548) target = $region68
        $region67: #{tpu_custom_call.1} parent=11 // pred_region
          %s552 = ssub.s32 16, 16
          %553 = vsyncadd [#allocation24], %s552
          %s555 = sshll.u32 [#allocation25], 4
          %s556 = int_to_ptr.vmem [resolvable:$true] %s555
          %558 = dma.hbm_to_vmem [thread:$0]  %s14, 16, %s556, [#allocation24]
        $region68: #{tpu_custom_call.1} parent=11 // pred_fallthru
          _
      $region12: #{tpu_custom_call.1} parent=5 // pred_fallthru
        _
      %p559 = scmp.lt.s32.totalorder %s34, 2
      // Predicated region
      $region69: #{tpu_custom_call.1} parent=5 // pred_check
        %p560 = pneg %p559
      $region70: #{tpu_custom_call.1} parent=5 // pred_check_branch
        %562 = sbr.rel (%p560) target = $region72
      $region71: #{tpu_custom_call.1} parent=5 // pred_region
        // Predicated region
        $region73: #{tpu_custom_call.1} parent=71 // pred_check
          %p563 = pneg %p54
        $region74: #{tpu_custom_call.1} parent=71 // pred_check_branch
          %565 = sbr.rel (%p563) target = $region76
        $region75: #{tpu_custom_call.1} parent=71 // pred_region
          %s566 = sand.u32 %s44, 1
          %s567 = scalar_lea.sflag [#allocation3], %s566
          %s568 = sand.u32 %s44, 1
          %s569 = smul.addr %s568, 8
          %s570 = scalar_lea.vmem [#allocation2], %s569
          %s572 = ssub.s32 128, 128
          %573 = vsyncadd %s567, %s572
          %s574 = smul.addr %s34, 128
          %s575 = scalar_lea.hbm %s0, %s574
          %s577 = sshll.u32 %s570, 4
          %s578 = int_to_ptr.vmem [resolvable:$true] %s577
          %580 = dma.hbm_to_vmem [thread:$0]  %s575, 128, %s578, %s567
        $region76: #{tpu_custom_call.1} parent=71 // pred_fallthru
          _
      $region72: #{tpu_custom_call.1} parent=5 // pred_fallthru
        _
      %p581 = scmp.le.s32.totalorder 1, %s34
      %p582 = scmp.lt.s32.totalorder %s34, 3
      %p583 = pnand %p581, %p582
      %p584 = pneg %p583
      // Predicated region
      $region77: #{tpu_custom_call.1} parent=5 // pred_check
        _
      $region78: #{tpu_custom_call.1} parent=5 // pred_check_branch
        %586 = sbr.rel (%p583) target = $region80
      $region79: #{tpu_custom_call.1} parent=5 // pred_region
        %s587 = ssub.s32 %s34, 1
        %s588 = sand.u32 %s47, 1
        %s589 = scalar_lea.sflag [#allocation3], %s588
        %s590 = sand.u32 %s47, 1
        %s591 = smul.addr %s590, 8
        %s592 = scalar_lea.vmem [#allocation2], %s591
        // Predicated region
        $region81: #{tpu_custom_call.1} parent=79 // pred_check
          %p593 = pneg %p60
        $region82: #{tpu_custom_call.1} parent=79 // pred_check_branch
          %595 = sbr.rel (%p593) target = $region84
        $region83: #{tpu_custom_call.1} parent=79 // pred_region
          %596 = dma.done %s589, 128
        $region84: #{tpu_custom_call.1} parent=79 // pred_fallthru
          _
        // Predicated region
        $region85: #{tpu_custom_call.1} parent=79 // pred_check
          %p597 = pneg %p81
        $region86: #{tpu_custom_call.1} parent=79 // pred_check_branch
          %599 = sbr.rel (%p597) target = $region88
        $region87: #{tpu_custom_call.1} parent=79 // pred_region
          %600 = dma.done [#allocation6], 16
        $region88: #{tpu_custom_call.1} parent=79 // pred_fallthru
          _
        // Predicated region
        $region89: #{tpu_custom_call.1} parent=79 // pred_check
          %p601 = pneg %p102
        $region90: #{tpu_custom_call.1} parent=79 // pred_check_branch
          %603 = sbr.rel (%p601) target = $region92
        $region91: #{tpu_custom_call.1} parent=79 // pred_region
          %604 = dma.done [#allocation6], 16
        $region92: #{tpu_custom_call.1} parent=79 // pred_fallthru
          _
        // Predicated region
        $region93: #{tpu_custom_call.1} parent=79 // pred_check
          %p605 = pneg %p123
        $region94: #{tpu_custom_call.1} parent=79 // pred_check_branch
          %607 = sbr.rel (%p605) target = $region96
        $region95: #{tpu_custom_call.1} parent=79 // pred_region
          %608 = dma.done [#allocation9], 256
        $region96: #{tpu_custom_call.1} parent=79 // pred_fallthru
          _
        // Predicated region
        $region97: #{tpu_custom_call.1} parent=79 // pred_check
          %p609 = pneg %p144
        $region98: #{tpu_custom_call.1} parent=79 // pred_check_branch
          %611 = sbr.rel (%p609) target = $region100
        $region99: #{tpu_custom_call.1} parent=79 // pred_region
          %612 = dma.done [#allocation9], 16
        $region100: #{tpu_custom_call.1} parent=79 // pred_fallthru
          _
        // Predicated region
        $region101: #{tpu_custom_call.1} parent=79 // pred_check
          %p613 = pneg %p165
        $region102: #{tpu_custom_call.1} parent=79 // pred_check_branch
          %615 = sbr.rel (%p613) target = $region104
        $region103: #{tpu_custom_call.1} parent=79 // pred_region
          %616 = dma.done [#allocation12], 256
        $region104: #{tpu_custom_call.1} parent=79 // pred_fallthru
          _
        // Predicated region
        $region105: #{tpu_custom_call.1} parent=79 // pred_check
          %p617 = pneg %p186
        $region106: #{tpu_custom_call.1} parent=79 // pred_check_branch
          %619 = sbr.rel (%p617) target = $region108
        $region107: #{tpu_custom_call.1} parent=79 // pred_region
          %620 = dma.done [#allocation12], 16
        $region108: #{tpu_custom_call.1} parent=79 // pred_fallthru
          _
        // Predicated region
        $region109: #{tpu_custom_call.1} parent=79 // pred_check
          %p621 = pneg %p207
        $region110: #{tpu_custom_call.1} parent=79 // pred_check_branch
          %623 = sbr.rel (%p621) target = $region112
        $region111: #{tpu_custom_call.1} parent=79 // pred_region
          %624 = dma.done [#allocation15], 256
        $region112: #{tpu_custom_call.1} parent=79 // pred_fallthru
          _
        // Predicated region
        $region113: #{tpu_custom_call.1} parent=79 // pred_check
          %p625 = pneg %p228
        $region114: #{tpu_custom_call.1} parent=79 // pred_check_branch
          %627 = sbr.rel (%p625) target = $region116
        $region115: #{tpu_custom_call.1} parent=79 // pred_region
          %628 = dma.done [#allocation15], 16
        $region116: #{tpu_custom_call.1} parent=79 // pred_fallthru
          _
        // Predicated region
        $region117: #{tpu_custom_call.1} parent=79 // pred_check
          %p629 = pneg %p249
        $region118: #{tpu_custom_call.1} parent=79 // pred_check_branch
          %631 = sbr.rel (%p629) target = $region120
        $region119: #{tpu_custom_call.1} parent=79 // pred_region
          %632 = dma.done [#allocation18], 16
        $region120: #{tpu_custom_call.1} parent=79 // pred_fallthru
          _
        // Predicated region
        $region121: #{tpu_custom_call.1} parent=79 // pred_check
          %p633 = pneg %p270
        $region122: #{tpu_custom_call.1} parent=79 // pred_check_branch
          %635 = sbr.rel (%p633) target = $region124
        $region123: #{tpu_custom_call.1} parent=79 // pred_region
          %636 = dma.done [#allocation18], 16
        $region124: #{tpu_custom_call.1} parent=79 // pred_fallthru
          _
        // Predicated region
        $region125: #{tpu_custom_call.1} parent=79 // pred_check
          %p637 = pneg %p291
        $region126: #{tpu_custom_call.1} parent=79 // pred_check_branch
          %639 = sbr.rel (%p637) target = $region128
        $region127: #{tpu_custom_call.1} parent=79 // pred_region
          %640 = dma.done [#allocation21], 256
        $region128: #{tpu_custom_call.1} parent=79 // pred_fallthru
          _
        // Predicated region
        $region129: #{tpu_custom_call.1} parent=79 // pred_check
          %p641 = pneg %p312
        $region130: #{tpu_custom_call.1} parent=79 // pred_check_branch
          %643 = sbr.rel (%p641) target = $region132
        $region131: #{tpu_custom_call.1} parent=79 // pred_region
          %644 = dma.done [#allocation21], 16
        $region132: #{tpu_custom_call.1} parent=79 // pred_fallthru
          _
        // Predicated region
        $region133: #{tpu_custom_call.1} parent=79 // pred_check
          %p645 = pneg %p333
        $region134: #{tpu_custom_call.1} parent=79 // pred_check_branch
          %647 = sbr.rel (%p645) target = $region136
        $region135: #{tpu_custom_call.1} parent=79 // pred_region
          %648 = dma.done [#allocation24], 512
        $region136: #{tpu_custom_call.1} parent=79 // pred_fallthru
          _
        // Predicated region
        $region137: #{tpu_custom_call.1} parent=79 // pred_check
          %p649 = pneg %p354
        $region138: #{tpu_custom_call.1} parent=79 // pred_check_branch
          %651 = sbr.rel (%p649) target = $region140
        $region139: #{tpu_custom_call.1} parent=79 // pred_region
          %652 = dma.done [#allocation24], 16
        $region140: #{tpu_custom_call.1} parent=79 // pred_fallthru
          _
        %s653 = sand.u32 %s47, 1
        %s654 = scalar_lea.sflag [#allocation3], %s653
        %s655 = sand.u32 %s47, 1
        %s656 = smul.addr %s655, 8
        %s657 = scalar_lea.vmem [#allocation2], %s656
        %p658 = pneg %p60
        %p659 = pneg %p57
        %p660 = pneg %p81
        %p661 = pneg %p78
        %p662 = pneg %p102
        %p663 = pneg %p99
        %p664 = pneg %p123
        %p665 = pneg %p120
        %p666 = pneg %p144
        %p667 = pneg %p141
        %p668 = pneg %p165
        %p669 = pneg %p162
        %p670 = pneg %p186
        %p671 = pneg %p183
        %p672 = pneg %p207
        %p673 = pneg %p204
        %p674 = pneg %p228
        %p675 = pneg %p225
        %p676 = pneg %p249
        %p677 = pneg %p246
        %p678 = pneg %p270
        %p679 = pneg %p267
        %p680 = pneg %p291
        %p681 = pneg %p288
        %p682 = pneg %p312
        %p683 = pneg %p309
        %p684 = pneg %p333
        %p685 = pneg %p330
        %p686 = pneg %p354
        %p687 = pneg %p351
        %p688 = pneg %p380
        %p689 = pneg %p377
        %s690 = sand.u32 %s367, 1
        %s691 = scalar_lea.sflag [#allocation4], %s690
        %s692 = sand.u32 %s367, 1
        %s693 = smul.addr %s692, 8
        %s694 = scalar_lea.vmem [#allocation26], %s693
        %v696 = vld [vmem:[%s592] sm:$0xff]
        %v697 = vld [vmem:[#allocation5] sm:$0x1]
        %v698 = vld [vmem:[#allocation7] sm:$0x1]
        %vm699 = vcmask 261120
        %v700 = vsel %vm699, %v696, 0.0
        %701 = vadd.xlane.f32.xlu0 %v700
        %v702 = vpop.xlane.xlu0 %701
        %v703 = vrcp.pop 32.0
        %v704 = vmul.f32 %v702, %v703
        %v705 = vsub.f32 %v696, %v704
        %v706 = vmul.f32 %v705, %v705
        %v707 = vsel %vm699, %v706, 0.0
        %708 = vadd.xlane.f32.xlu0 %v707
        %v709 = vpop.xlane.xlu0 %708
        %v710 = vmul.f32 %v709, %v703
        %v711 = vadd.f32 %v710, 1e-05
        %v712 = vrsqrt.pop %v711
        %v713 = vmul.f32 %v705, %v712
        %v715 = vlaneseq
        %v716 = vshrl.u32 %v715, 7
        %v717 = vsub.s32 0, %v716
        %v718 = vrot.slane %v697, %v717
        %v720 = vmul.f32 %v713, %v718
        %v722 = vlaneseq
        %v723 = vshrl.u32 %v722, 7
        %v724 = vsub.s32 0, %v723
        %v725 = vrot.slane %v698, %v724
        %v727 = vadd.f32 %v720, %v725
        %v728 = vpack.c.bf16 %v727, %v727
        %v729 = vld [vmem:[#allocation8] sm:$0xf]
        %v730 = vld [vmem:[#allocation8 + $0x4] sm:$0xf]
        %v731 = vld [vmem:[#allocation8 + $0x8] sm:$0xf]
        %v732 = vld [vmem:[#allocation8 + $0xc] sm:$0xf]
        %v733 = vld [vmem:[#allocation10] sm:$0x1]
        %v735 = vlaneseq
        %v736 = vshrl.u32 %v735, 7
        %v737 = vsub.s32 0, %v736
        %v738 = vrot.slane %v733, %v737
        %v744 = vunpack.c.l.b16 %v729
        %v745 = vunpack.c.l.b16 %v730
        %v746 = vunpack.c.l.b16 %v731
        %v747 = vunpack.c.l.b16 %v732
        %v748 = vpack.c.b16 %v745, %v744
        %v749 = vpack.c.b16 %v747, %v746
        %v753 = vsel %vm699, %v728, 0
        %755 = vmatprep.subr.bf16.mxu0 0
        %756 = vmatpush1.bf16.msra.mxu0 %v748
        %757 = vmatprep.subr.bf16.mxu0 0
        %758 = vmatpush1.bf16.msra.mxu0 %v749
        %759 = vmatprep.subr.bf16.mxu0 0
        %760 = vmatpush1.bf16.msra.mxu0 0
        %761 = vmatprep.subr.bf16.mxu0 0
        %762 = vmatpush1.bf16.msra.mxu0 0
        %763 = vmatprep.subr.bf16.mxu0 0
        %764 = vmatpush1.bf16.msra.mxu0 0
        %765 = vmatprep.subr.bf16.mxu0 0
        %766 = vmatpush1.bf16.msra.mxu0 0
        %767 = vmatprep.subr.bf16.mxu0 0
        %768 = vmatpush1.bf16.msra.mxu0 0
        %769 = vmatprep.subr.bf16.mxu0 0
        %770 = vmatpush1.bf16.msra.mxu0 0
        %771 = vmatprep.subr.bf16.mxu0 0
        %772 = vmatpush1.bf16.msra.mxu0 0
        %773 = vmatprep.subr.bf16.mxu0 0
        %774 = vmatpush1.bf16.msra.mxu0 0
        %775 = vmatprep.subr.bf16.mxu0 0
        %776 = vmatpush1.bf16.msra.mxu0 0
        %777 = vmatprep.subr.bf16.mxu0 0
        %778 = vmatpush1.bf16.msra.mxu0 0
        %779 = vmatprep.subr.bf16.mxu0 0
        %780 = vmatpush1.bf16.msra.mxu0 0
        %781 = vmatprep.subr.bf16.mxu0 0
        %782 = vmatpush1.bf16.msra.mxu0 0
        %783 = vmatprep.subr.bf16.mxu0 0
        %784 = vmatpush1.bf16.msra.mxu0 0
        %785 = vmatprep.subr.bf16.mxu0 0
        %786 = vmatpush1.bf16.msra.mxu0 0
        %787 = vmatprep.mubr.bf16.mxu0 0
        %788 = vmatmul.mubr.bf16.gmra.mrb[0].mxu0 %v753
        %v789 = vpop.f32.mrb[0].mxu0
        %v790 = vadd.f32 %v738, %v789
        %v791 = vpop.f32.mrb[0].mxu0
        %v792 = vpop.f32.mrb[0].mxu0
        %v793 = vpop.f32.mrb[0].mxu0
        %794 = vdwg.mxu0
        %v795 = vld [vmem:[#allocation11] sm:$0xf]
        %v796 = vld [vmem:[#allocation11 + $0x4] sm:$0xf]
        %v797 = vld [vmem:[#allocation11 + $0x8] sm:$0xf]
        %v798 = vld [vmem:[#allocation11 + $0xc] sm:$0xf]
        %v799 = vld [vmem:[#allocation13] sm:$0x1]
        %v801 = vlaneseq
        %v802 = vshrl.u32 %v801, 7
        %v803 = vsub.s32 0, %v802
        %v804 = vrot.slane %v799, %v803
        %v810 = vunpack.c.l.b16 %v795
        %v811 = vunpack.c.l.b16 %v796
        %v812 = vunpack.c.l.b16 %v797
        %v813 = vunpack.c.l.b16 %v798
        %v814 = vpack.c.b16 %v811, %v810
        %v815 = vpack.c.b16 %v813, %v812
        %818 = vmatprep.subr.bf16.mxu0 0
        %819 = vmatpush1.bf16.msra.mxu0 %v814
        %820 = vmatprep.subr.bf16.mxu0 0
        %821 = vmatpush1.bf16.msra.mxu0 %v815
        %822 = vmatprep.subr.bf16.mxu0 0
        %823 = vmatpush1.bf16.msra.mxu0 0
        %824 = vmatprep.subr.bf16.mxu0 0
        %825 = vmatpush1.bf16.msra.mxu0 0
        %826 = vmatprep.subr.bf16.mxu0 0
        %827 = vmatpush1.bf16.msra.mxu0 0
        %828 = vmatprep.subr.bf16.mxu0 0
        %829 = vmatpush1.bf16.msra.mxu0 0
        %830 = vmatprep.subr.bf16.mxu0 0
        %831 = vmatpush1.bf16.msra.mxu0 0
        %832 = vmatprep.subr.bf16.mxu0 0
        %833 = vmatpush1.bf16.msra.mxu0 0
        %834 = vmatprep.subr.bf16.mxu0 0
        %835 = vmatpush1.bf16.msra.mxu0 0
        %836 = vmatprep.subr.bf16.mxu0 0
        %837 = vmatpush1.bf16.msra.mxu0 0
        %838 = vmatprep.subr.bf16.mxu0 0
        %839 = vmatpush1.bf16.msra.mxu0 0
        %840 = vmatprep.subr.bf16.mxu0 0
        %841 = vmatpush1.bf16.msra.mxu0 0
        %842 = vmatprep.subr.bf16.mxu0 0
        %843 = vmatpush1.bf16.msra.mxu0 0
        %844 = vmatprep.subr.bf16.mxu0 0
        %845 = vmatpush1.bf16.msra.mxu0 0
        %846 = vmatprep.subr.bf16.mxu0 0
        %847 = vmatpush1.bf16.msra.mxu0 0
        %848 = vmatprep.subr.bf16.mxu0 0
        %849 = vmatpush1.bf16.msra.mxu0 0
        %850 = vmatprep.mubr.bf16.mxu0 0
        %851 = vmatmul.mubr.bf16.gmra.mrb[0].mxu0 %v753
        %v852 = vpop.f32.mrb[0].mxu0
        %v853 = vadd.f32 %v804, %v852
        %v854 = vpop.f32.mrb[0].mxu0
        %v855 = vpop.f32.mrb[0].mxu0
        %v856 = vpop.f32.mrb[0].mxu0
        %857 = vdwg.mxu0
        %v858 = vld [vmem:[#allocation14] sm:$0xf]
        %v859 = vld [vmem:[#allocation14 + $0x4] sm:$0xf]
        %v860 = vld [vmem:[#allocation14 + $0x8] sm:$0xf]
        %v861 = vld [vmem:[#allocation14 + $0xc] sm:$0xf]
        %v862 = vld [vmem:[#allocation16] sm:$0x1]
        %v864 = vlaneseq
        %v865 = vshrl.u32 %v864, 7
        %v866 = vsub.s32 0, %v865
        %v867 = vrot.slane %v862, %v866
        %v873 = vunpack.c.l.b16 %v858
        %v874 = vunpack.c.l.b16 %v859
        %v875 = vunpack.c.l.b16 %v860
        %v876 = vunpack.c.l.b16 %v861
        %v877 = vpack.c.b16 %v874, %v873
        %v878 = vpack.c.b16 %v876, %v875
        %881 = vmatprep.subr.bf16.mxu0 0
        %882 = vmatpush1.bf16.msra.mxu0 %v877
        %883 = vmatprep.subr.bf16.mxu0 0
        %884 = vmatpush1.bf16.msra.mxu0 %v878
        %885 = vmatprep.subr.bf16.mxu0 0
        %886 = vmatpush1.bf16.msra.mxu0 0
        %887 = vmatprep.subr.bf16.mxu0 0
        %888 = vmatpush1.bf16.msra.mxu0 0
        %889 = vmatprep.subr.bf16.mxu0 0
        %890 = vmatpush1.bf16.msra.mxu0 0
        %891 = vmatprep.subr.bf16.mxu0 0
        %892 = vmatpush1.bf16.msra.mxu0 0
        %893 = vmatprep.subr.bf16.mxu0 0
        %894 = vmatpush1.bf16.msra.mxu0 0
        %895 = vmatprep.subr.bf16.mxu0 0
        %896 = vmatpush1.bf16.msra.mxu0 0
        %897 = vmatprep.subr.bf16.mxu0 0
        %898 = vmatpush1.bf16.msra.mxu0 0
        %899 = vmatprep.subr.bf16.mxu0 0
        %900 = vmatpush1.bf16.msra.mxu0 0
        %901 = vmatprep.subr.bf16.mxu0 0
        %902 = vmatpush1.bf16.msra.mxu0 0
        %903 = vmatprep.subr.bf16.mxu0 0
        %904 = vmatpush1.bf16.msra.mxu0 0
        %905 = vmatprep.subr.bf16.mxu0 0
        %906 = vmatpush1.bf16.msra.mxu0 0
        %907 = vmatprep.subr.bf16.mxu0 0
        %908 = vmatpush1.bf16.msra.mxu0 0
        %909 = vmatprep.subr.bf16.mxu0 0
        %910 = vmatpush1.bf16.msra.mxu0 0
        %911 = vmatprep.subr.bf16.mxu0 0
        %912 = vmatpush1.bf16.msra.mxu0 0
        %913 = vmatprep.mubr.bf16.mxu0 0
        %914 = vmatmul.mubr.bf16.gmra.mrb[0].mxu0 %v753
        %v915 = vpop.f32.mrb[0].mxu0
        %v916 = vadd.f32 %v867, %v915
        %v917 = vpop.f32.mrb[0].mxu0
        %v918 = vpop.f32.mrb[0].mxu0
        %v919 = vpop.f32.mrb[0].mxu0
        %920 = vdwg.mxu0
        %922 = vrot.lane.b32.xlu0 %v790, 120
        %v923 = vpop.permute.xlu0 %922
        %925 = vrot.lane.b32.xlu0 %v790, 112
        %v926 = vpop.permute.xlu0 %925
        %928 = vrot.lane.b32.xlu0 %v790, 104
        %v929 = vpop.permute.xlu0 %928
        %v931 = vpack.c.bf16 %v790, %v790
        %v932 = vpack.c.bf16 %v923, %v923
        %v933 = vpack.c.bf16 %v926, %v926
        %v934 = vpack.c.bf16 %v929, %v929
        %936 = vrot.lane.b32.xlu0 %v853, 120
        %v937 = vpop.permute.xlu0 %936
        %939 = vrot.lane.b32.xlu0 %v853, 112
        %v940 = vpop.permute.xlu0 %939
        %942 = vrot.lane.b32.xlu0 %v853, 104
        %v943 = vpop.permute.xlu0 %942
        %v945 = vpack.c.bf16 %v853, %v853
        %v946 = vpack.c.bf16 %v937, %v937
        %v947 = vpack.c.bf16 %v940, %v940
        %v948 = vpack.c.bf16 %v943, %v943
        %950 = vrot.lane.b32.xlu0 %v916, 120
        %v951 = vpop.permute.xlu0 %950
        %953 = vrot.lane.b32.xlu0 %v916, 112
        %v954 = vpop.permute.xlu0 %953
        %956 = vrot.lane.b32.xlu0 %v916, 104
        %v957 = vpop.permute.xlu0 %956
        %v959 = vpack.c.bf16 %v916, %v916
        %v960 = vpack.c.bf16 %v951, %v951
        %v961 = vpack.c.bf16 %v954, %v954
        %v962 = vpack.c.bf16 %v957, %v957
        %vm963 = vcmask 64512
        %v965 = vsel %vm963, %v931, 0
        %v968 = vsel %vm963, %v945, 0
        %970 = vmatprep.subr.bf16.mxu0 0
        %971 = vmatpush1.bf16.xpose.msra.mxu0 %v968
        %972 = vmatprep.subr.bf16.mxu0 0
        %973 = vmatpush1.bf16.xpose.msra.mxu0 0
        %974 = vmatprep.subr.bf16.mxu0 0
        %975 = vmatpush1.bf16.xpose.msra.mxu0 0
        %976 = vmatprep.subr.bf16.mxu0 0
        %977 = vmatpush1.bf16.xpose.msra.mxu0 0
        %978 = vmatprep.subr.bf16.mxu0 0
        %979 = vmatpush1.bf16.xpose.msra.mxu0 0
        %980 = vmatprep.subr.bf16.mxu0 0
        %981 = vmatpush1.bf16.xpose.msra.mxu0 0
        %982 = vmatprep.subr.bf16.mxu0 0
        %983 = vmatpush1.bf16.xpose.msra.mxu0 0
        %984 = vmatprep.subr.bf16.mxu0 0
        %985 = vmatpush1.bf16.xpose.msra.mxu0 0
        %986 = vmatprep.subr.bf16.mxu0 0
        %987 = vmatpush1.bf16.xpose.msra.mxu0 0
        %988 = vmatprep.subr.bf16.mxu0 0
        %989 = vmatpush1.bf16.xpose.msra.mxu0 0
        %990 = vmatprep.subr.bf16.mxu0 0
        %991 = vmatpush1.bf16.xpose.msra.mxu0 0
        %992 = vmatprep.subr.bf16.mxu0 0
        %993 = vmatpush1.bf16.xpose.msra.mxu0 0
        %994 = vmatprep.subr.bf16.mxu0 0
        %995 = vmatpush1.bf16.xpose.msra.mxu0 0
        %996 = vmatprep.subr.bf16.mxu0 0
        %997 = vmatpush1.bf16.xpose.msra.mxu0 0
        %998 = vmatprep.subr.bf16.mxu0 0
        %999 = vmatpush1.bf16.xpose.msra.mxu0 0
        %1000 = vmatprep.subr.bf16.mxu0 0
        %1001 = vmatpush1.bf16.xpose.msra.mxu0 0
        %1002 = vmatprep.mubr.bf16.mxu0 0
        %1003 = vmatmul.mubr.bf16.gmra.mrb[0].mxu0 %v965
        %v1004 = vpop.f32.mrb[0].mxu0
        %v1005 = vadd.f32 0.0, %v1004
        %v1006 = vpop.f32.mrb[0].mxu0
        %v1007 = vpop.f32.mrb[0].mxu0
        %v1008 = vpop.f32.mrb[0].mxu0
        %1009 = vdwg.mxu0
        %v1011 = vsel %vm963, %v932, 0
        %v1014 = vsel %vm963, %v946, 0
        %1016 = vmatprep.subr.bf16.mxu0 0
        %1017 = vmatpush1.bf16.xpose.msra.mxu0 %v1014
        %1018 = vmatprep.subr.bf16.mxu0 0
        %1019 = vmatpush1.bf16.xpose.msra.mxu0 0
        %1020 = vmatprep.subr.bf16.mxu0 0
        %1021 = vmatpush1.bf16.xpose.msra.mxu0 0
        %1022 = vmatprep.subr.bf16.mxu0 0
        %1023 = vmatpush1.bf16.xpose.msra.mxu0 0
        %1024 = vmatprep.subr.bf16.mxu0 0
        %1025 = vmatpush1.bf16.xpose.msra.mxu0 0
        %1026 = vmatprep.subr.bf16.mxu0 0
        %1027 = vmatpush1.bf16.xpose.msra.mxu0 0
        %1028 = vmatprep.subr.bf16.mxu0 0
        %1029 = vmatpush1.bf16.xpose.msra.mxu0 0
        %1030 = vmatprep.subr.bf16.mxu0 0
        %1031 = vmatpush1.bf16.xpose.msra.mxu0 0
        %1032 = vmatprep.subr.bf16.mxu0 0
        %1033 = vmatpush1.bf16.xpose.msra.mxu0 0
        %1034 = vmatprep.subr.bf16.mxu0 0
        %1035 = vmatpush1.bf16.xpose.msra.mxu0 0
        %1036 = vmatprep.subr.bf16.mxu0 0
        %1037 = vmatpush1.bf16.xpose.msra.mxu0 0
        %1038 = vmatprep.subr.bf16.mxu0 0
        %1039 = vmatpush1.bf16.xpose.msra.mxu0 0
        %1040 = vmatprep.subr.bf16.mxu0 0
        %1041 = vmatpush1.bf16.xpose.msra.mxu0 0
        %1042 = vmatprep.subr.bf16.mxu0 0
        %1043 = vmatpush1.bf16.xpose.msra.mxu0 0
        %1044 = vmatprep.subr.bf16.mxu0 0
        %1045 = vmatpush1.bf16.xpose.msra.mxu0 0
        %1046 = vmatprep.subr.bf16.mxu0 0
        %1047 = vmatpush1.bf16.xpose.msra.mxu0 0
        %1048 = vmatprep.mubr.bf16.mxu0 0
        %1049 = vmatmul.mubr.bf16.gmra.mrb[0].mxu0 %v1011
        %v1050 = vpop.f32.mrb[0].mxu0
        %v1051 = vadd.f32 0.0, %v1050
        %v1052 = vpop.f32.mrb[0].mxu0
        %v1053 = vpop.f32.mrb[0].mxu0
        %v1054 = vpop.f32.mrb[0].mxu0
        %1055 = vdwg.mxu0
        %v1057 = vsel %vm963, %v933, 0
        %v1060 = vsel %vm963, %v947, 0
        %1062 = vmatprep.subr.bf16.mxu0 0
        %1063 = vmatpush1.bf16.xpose.msra.mxu0 %v1060
        %1064 = vmatprep.subr.bf16.mxu0 0
        %1065 = vmatpush1.bf16.xpose.msra.mxu0 0
        %1066 = vmatprep.subr.bf16.mxu0 0
        %1067 = vmatpush1.bf16.xpose.msra.mxu0 0
        %1068 = vmatprep.subr.bf16.mxu0 0
        %1069 = vmatpush1.bf16.xpose.msra.mxu0 0
        %1070 = vmatprep.subr.bf16.mxu0 0
        %1071 = vmatpush1.bf16.xpose.msra.mxu0 0
        %1072 = vmatprep.subr.bf16.mxu0 0
        %1073 = vmatpush1.bf16.xpose.msra.mxu0 0
        %1074 = vmatprep.subr.bf16.mxu0 0
        %1075 = vmatpush1.bf16.xpose.msra.mxu0 0
        %1076 = vmatprep.subr.bf16.mxu0 0
        %1077 = vmatpush1.bf16.xpose.msra.mxu0 0
        %1078 = vmatprep.subr.bf16.mxu0 0
        %1079 = vmatpush1.bf16.xpose.msra.mxu0 0
        %1080 = vmatprep.subr.bf16.mxu0 0
        %1081 = vmatpush1.bf16.xpose.msra.mxu0 0
        %1082 = vmatprep.subr.bf16.mxu0 0
        %1083 = vmatpush1.bf16.xpose.msra.mxu0 0
        %1084 = vmatprep.subr.bf16.mxu0 0
        %1085 = vmatpush1.bf16.xpose.msra.mxu0 0
        %1086 = vmatprep.subr.bf16.mxu0 0
        %1087 = vmatpush1.bf16.xpose.msra.mxu0 0
        %1088 = vmatprep.subr.bf16.mxu0 0
        %1089 = vmatpush1.bf16.xpose.msra.mxu0 0
        %1090 = vmatprep.subr.bf16.mxu0 0
        %1091 = vmatpush1.bf16.xpose.msra.mxu0 0
        %1092 = vmatprep.subr.bf16.mxu0 0
        %1093 = vmatpush1.bf16.xpose.msra.mxu0 0
        %1094 = vmatprep.mubr.bf16.mxu0 0
        %1095 = vmatmul.mubr.bf16.gmra.mrb[0].mxu0 %v1057
        %v1096 = vpop.f32.mrb[0].mxu0
        %v1097 = vadd.f32 0.0, %v1096
        %v1098 = vpop.f32.mrb[0].mxu0
        %v1099 = vpop.f32.mrb[0].mxu0
        %v1100 = vpop.f32.mrb[0].mxu0
        %1101 = vdwg.mxu0
        %v1103 = vsel %vm963, %v934, 0
        %v1106 = vsel %vm963, %v948, 0
        %1108 = vmatprep.subr.bf16.mxu0 0
        %1109 = vmatpush1.bf16.xpose.msra.mxu0 %v1106
        %1110 = vmatprep.subr.bf16.mxu0 0
        %1111 = vmatpush1.bf16.xpose.msra.mxu0 0
        %1112 = vmatprep.subr.bf16.mxu0 0
        %1113 = vmatpush1.bf16.xpose.msra.mxu0 0
        %1114 = vmatprep.subr.bf16.mxu0 0
        %1115 = vmatpush1.bf16.xpose.msra.mxu0 0
        %1116 = vmatprep.subr.bf16.mxu0 0
        %1117 = vmatpush1.bf16.xpose.msra.mxu0 0
        %1118 = vmatprep.subr.bf16.mxu0 0
        %1119 = vmatpush1.bf16.xpose.msra.mxu0 0
        %1120 = vmatprep.subr.bf16.mxu0 0
        %1121 = vmatpush1.bf16.xpose.msra.mxu0 0
        %1122 = vmatprep.subr.bf16.mxu0 0
        %1123 = vmatpush1.bf16.xpose.msra.mxu0 0
        %1124 = vmatprep.subr.bf16.mxu0 0
        %1125 = vmatpush1.bf16.xpose.msra.mxu0 0
        %1126 = vmatprep.subr.bf16.mxu0 0
        %1127 = vmatpush1.bf16.xpose.msra.mxu0 0
        %1128 = vmatprep.subr.bf16.mxu0 0
        %1129 = vmatpush1.bf16.xpose.msra.mxu0 0
        %1130 = vmatprep.subr.bf16.mxu0 0
        %1131 = vmatpush1.bf16.xpose.msra.mxu0 0
        %1132 = vmatprep.subr.bf16.mxu0 0
        %1133 = vmatpush1.bf16.xpose.msra.mxu0 0
        %1134 = vmatprep.subr.bf16.mxu0 0
        %1135 = vmatpush1.bf16.xpose.msra.mxu0 0
        %1136 = vmatprep.subr.bf16.mxu0 0
        %1137 = vmatpush1.bf16.xpose.msra.mxu0 0
        %1138 = vmatprep.subr.bf16.mxu0 0
        %1139 = vmatpush1.bf16.xpose.msra.mxu0 0
        %1140 = vmatprep.mubr.bf16.mxu0 0
        %1141 = vmatmul.mubr.bf16.gmra.mrb[0].mxu0 %v1103
        %v1142 = vpop.f32.mrb[0].mxu0
        %v1143 = vadd.f32 0.0, %v1142
        %v1144 = vpop.f32.mrb[0].mxu0
        %v1145 = vpop.f32.mrb[0].mxu0
        %v1146 = vpop.f32.mrb[0].mxu0
        %1147 = vdwg.mxu0
        %v1148 = vsel %vm963, %v1005, -inf
        %1149 = vmax.xlane.f32.xlu0 %v1148
        %v1150 = vpop.xlane.xlu0 %1149
        %v1151 = vsel %vm963, %v1051, -inf
        %1152 = vmax.xlane.f32.xlu0 %v1151
        %v1153 = vpop.xlane.xlu0 %1152
        %v1154 = vsel %vm963, %v1097, -inf
        %1155 = vmax.xlane.f32.xlu0 %v1154
        %v1156 = vpop.xlane.xlu0 %1155
        %v1157 = vsel %vm963, %v1143, -inf
        %1158 = vmax.xlane.f32.xlu0 %v1157
        %v1159 = vpop.xlane.xlu0 %1158
        %v1160 = vsub.f32 %v1005, %v1150
        %v1161 = vsub.f32 %v1051, %v1153
        %v1162 = vsub.f32 %v1097, %v1156
        %v1163 = vsub.f32 %v1143, %v1159
        %v1164 = vmul.f32 %v1160, 1.442695
        %v1165 = vpow.pop %v1164
        %v1166 = vmul.f32 %v1161, 1.442695
        %v1167 = vpow.pop %v1166
        %v1168 = vmul.f32 %v1162, 1.442695
        %v1169 = vpow.pop %v1168
        %v1170 = vmul.f32 %v1163, 1.442695
        %v1171 = vpow.pop %v1170
        %v1172 = vsel %vm963, %v1165, 0.0
        %1173 = vadd.xlane.f32.xlu0 %v1172
        %v1174 = vpop.xlane.xlu0 %1173
        %v1175 = vsel %vm963, %v1167, 0.0
        %1176 = vadd.xlane.f32.xlu0 %v1175
        %v1177 = vpop.xlane.xlu0 %1176
        %v1178 = vsel %vm963, %v1169, 0.0
        %1179 = vadd.xlane.f32.xlu0 %v1178
        %v1180 = vpop.xlane.xlu0 %1179
        %v1181 = vsel %vm963, %v1171, 0.0
        %1182 = vadd.xlane.f32.xlu0 %v1181
        %v1183 = vpop.xlane.xlu0 %1182
        %v1184 = vrcp.pop %v1174
        %v1185 = vrcp.pop %v1177
        %v1186 = vrcp.pop %v1180
        %v1187 = vrcp.pop %v1183
        %v1188 = vmul.f32 %v1165, %v1184
        %v1189 = vmul.f32 %v1167, %v1185
        %v1190 = vmul.f32 %v1169, %v1186
        %v1191 = vmul.f32 %v1171, %v1187
        %v1192 = vpack.c.bf16 %v1188, %v1188
        %v1193 = vpack.c.bf16 %v1189, %v1189
        %v1194 = vpack.c.bf16 %v1190, %v1190
        %v1195 = vpack.c.bf16 %v1191, %v1191
        %v1197 = vsel %vm963, %v1192, 0
        %vm1199 = vcmask 1043456
        %v1201 = vsel %vm1199, %v959, 0
        %1203 = vmatprep.subr.bf16.mxu0 0
        %1204 = vmatpush1.bf16.msra.mxu0 %v1201
        %1205 = vmatprep.subr.bf16.mxu0 0
        %1206 = vmatpush1.bf16.msra.mxu0 0
        %1207 = vmatprep.subr.bf16.mxu0 0
        %1208 = vmatpush1.bf16.msra.mxu0 0
        %1209 = vmatprep.subr.bf16.mxu0 0
        %1210 = vmatpush1.bf16.msra.mxu0 0
        %1211 = vmatprep.subr.bf16.mxu0 0
        %1212 = vmatpush1.bf16.msra.mxu0 0
        %1213 = vmatprep.subr.bf16.mxu0 0
        %1214 = vmatpush1.bf16.msra.mxu0 0
        %1215 = vmatprep.subr.bf16.mxu0 0
        %1216 = vmatpush1.bf16.msra.mxu0 0
        %1217 = vmatprep.subr.bf16.mxu0 0
        %1218 = vmatpush1.bf16.msra.mxu0 0
        %1219 = vmatprep.subr.bf16.mxu0 0
        %1220 = vmatpush1.bf16.msra.mxu0 0
        %1221 = vmatprep.subr.bf16.mxu0 0
        %1222 = vmatpush1.bf16.msra.mxu0 0
        %1223 = vmatprep.subr.bf16.mxu0 0
        %1224 = vmatpush1.bf16.msra.mxu0 0
        %1225 = vmatprep.subr.bf16.mxu0 0
        %1226 = vmatpush1.bf16.msra.mxu0 0
        %1227 = vmatprep.subr.bf16.mxu0 0
        %1228 = vmatpush1.bf16.msra.mxu0 0
        %1229 = vmatprep.subr.bf16.mxu0 0
        %1230 = vmatpush1.bf16.msra.mxu0 0
        %1231 = vmatprep.subr.bf16.mxu0 0
        %1232 = vmatpush1.bf16.msra.mxu0 0
        %1233 = vmatprep.subr.bf16.mxu0 0
        %1234 = vmatpush1.bf16.msra.mxu0 0
        %1235 = vmatprep.mubr.bf16.mxu0 0
        %1236 = vmatmul.mubr.bf16.gmra.mrb[0].mxu0 %v1197
        %v1237 = vpop.f32.mrb[0].mxu0
        %v1238 = vadd.f32 0.0, %v1237
        %v1239 = vpop.f32.mrb[0].mxu0
        %v1240 = vpop.f32.mrb[0].mxu0
        %v1241 = vpop.f32.mrb[0].mxu0
        %1242 = vdwg.mxu0
        %v1244 = vsel %vm963, %v1193, 0
        %v1247 = vsel %vm1199, %v960, 0
        %1249 = vmatprep.subr.bf16.mxu0 0
        %1250 = vmatpush1.bf16.msra.mxu0 %v1247
        %1251 = vmatprep.subr.bf16.mxu0 0
        %1252 = vmatpush1.bf16.msra.mxu0 0
        %1253 = vmatprep.subr.bf16.mxu0 0
        %1254 = vmatpush1.bf16.msra.mxu0 0
        %1255 = vmatprep.subr.bf16.mxu0 0
        %1256 = vmatpush1.bf16.msra.mxu0 0
        %1257 = vmatprep.subr.bf16.mxu0 0
        %1258 = vmatpush1.bf16.msra.mxu0 0
        %1259 = vmatprep.subr.bf16.mxu0 0
        %1260 = vmatpush1.bf16.msra.mxu0 0
        %1261 = vmatprep.subr.bf16.mxu0 0
        %1262 = vmatpush1.bf16.msra.mxu0 0
        %1263 = vmatprep.subr.bf16.mxu0 0
        %1264 = vmatpush1.bf16.msra.mxu0 0
        %1265 = vmatprep.subr.bf16.mxu0 0
        %1266 = vmatpush1.bf16.msra.mxu0 0
        %1267 = vmatprep.subr.bf16.mxu0 0
        %1268 = vmatpush1.bf16.msra.mxu0 0
        %1269 = vmatprep.subr.bf16.mxu0 0
        %1270 = vmatpush1.bf16.msra.mxu0 0
        %1271 = vmatprep.subr.bf16.mxu0 0
        %1272 = vmatpush1.bf16.msra.mxu0 0
        %1273 = vmatprep.subr.bf16.mxu0 0
        %1274 = vmatpush1.bf16.msra.mxu0 0
        %1275 = vmatprep.subr.bf16.mxu0 0
        %1276 = vmatpush1.bf16.msra.mxu0 0
        %1277 = vmatprep.subr.bf16.mxu0 0
        %1278 = vmatpush1.bf16.msra.mxu0 0
        %1279 = vmatprep.subr.bf16.mxu0 0
        %1280 = vmatpush1.bf16.msra.mxu0 0
        %1281 = vmatprep.mubr.bf16.mxu0 0
        %1282 = vmatmul.mubr.bf16.gmra.mrb[0].mxu0 %v1244
        %v1283 = vpop.f32.mrb[0].mxu0
        %v1284 = vadd.f32 0.0, %v1283
        %v1285 = vpop.f32.mrb[0].mxu0
        %v1286 = vpop.f32.mrb[0].mxu0
        %v1287 = vpop.f32.mrb[0].mxu0
        %1288 = vdwg.mxu0
        %v1290 = vsel %vm963, %v1194, 0
        %v1293 = vsel %vm1199, %v961, 0
        %1295 = vmatprep.subr.bf16.mxu0 0
        %1296 = vmatpush1.bf16.msra.mxu0 %v1293
        %1297 = vmatprep.subr.bf16.mxu0 0
        %1298 = vmatpush1.bf16.msra.mxu0 0
        %1299 = vmatprep.subr.bf16.mxu0 0
        %1300 = vmatpush1.bf16.msra.mxu0 0
        %1301 = vmatprep.subr.bf16.mxu0 0
        %1302 = vmatpush1.bf16.msra.mxu0 0
        %1303 = vmatprep.subr.bf16.mxu0 0
        %1304 = vmatpush1.bf16.msra.mxu0 0
        %1305 = vmatprep.subr.bf16.mxu0 0
        %1306 = vmatpush1.bf16.msra.mxu0 0
        %1307 = vmatprep.subr.bf16.mxu0 0
        %1308 = vmatpush1.bf16.msra.mxu0 0
        %1309 = vmatprep.subr.bf16.mxu0 0
        %1310 = vmatpush1.bf16.msra.mxu0 0
        %1311 = vmatprep.subr.bf16.mxu0 0
        %1312 = vmatpush1.bf16.msra.mxu0 0
        %1313 = vmatprep.subr.bf16.mxu0 0
        %1314 = vmatpush1.bf16.msra.mxu0 0
        %1315 = vmatprep.subr.bf16.mxu0 0
        %1316 = vmatpush1.bf16.msra.mxu0 0
        %1317 = vmatprep.subr.bf16.mxu0 0
        %1318 = vmatpush1.bf16.msra.mxu0 0
        %1319 = vmatprep.subr.bf16.mxu0 0
        %1320 = vmatpush1.bf16.msra.mxu0 0
        %1321 = vmatprep.subr.bf16.mxu0 0
        %1322 = vmatpush1.bf16.msra.mxu0 0
        %1323 = vmatprep.subr.bf16.mxu0 0
        %1324 = vmatpush1.bf16.msra.mxu0 0
        %1325 = vmatprep.subr.bf16.mxu0 0
        %1326 = vmatpush1.bf16.msra.mxu0 0
        %1327 = vmatprep.mubr.bf16.mxu0 0
        %1328 = vmatmul.mubr.bf16.gmra.mrb[0].mxu0 %v1290
        %v1329 = vpop.f32.mrb[0].mxu0
        %v1330 = vadd.f32 0.0, %v1329
        %v1331 = vpop.f32.mrb[0].mxu0
        %v1332 = vpop.f32.mrb[0].mxu0
        %v1333 = vpop.f32.mrb[0].mxu0
        %1334 = vdwg.mxu0
        %v1336 = vsel %vm963, %v1195, 0
        %v1339 = vsel %vm1199, %v962, 0
        %1341 = vmatprep.subr.bf16.mxu0 0
        %1342 = vmatpush1.bf16.msra.mxu0 %v1339
        %1343 = vmatprep.subr.bf16.mxu0 0
        %1344 = vmatpush1.bf16.msra.mxu0 0
        %1345 = vmatprep.subr.bf16.mxu0 0
        %1346 = vmatpush1.bf16.msra.mxu0 0
        %1347 = vmatprep.subr.bf16.mxu0 0
        %1348 = vmatpush1.bf16.msra.mxu0 0
        %1349 = vmatprep.subr.bf16.mxu0 0
        %1350 = vmatpush1.bf16.msra.mxu0 0
        %1351 = vmatprep.subr.bf16.mxu0 0
        %1352 = vmatpush1.bf16.msra.mxu0 0
        %1353 = vmatprep.subr.bf16.mxu0 0
        %1354 = vmatpush1.bf16.msra.mxu0 0
        %1355 = vmatprep.subr.bf16.mxu0 0
        %1356 = vmatpush1.bf16.msra.mxu0 0
        %1357 = vmatprep.subr.bf16.mxu0 0
        %1358 = vmatpush1.bf16.msra.mxu0 0
        %1359 = vmatprep.subr.bf16.mxu0 0
        %1360 = vmatpush1.bf16.msra.mxu0 0
        %1361 = vmatprep.subr.bf16.mxu0 0
        %1362 = vmatpush1.bf16.msra.mxu0 0
        %1363 = vmatprep.subr.bf16.mxu0 0
        %1364 = vmatpush1.bf16.msra.mxu0 0
        %1365 = vmatprep.subr.bf16.mxu0 0
        %1366 = vmatpush1.bf16.msra.mxu0 0
        %1367 = vmatprep.subr.bf16.mxu0 0
        %1368 = vmatpush1.bf16.msra.mxu0 0
        %1369 = vmatprep.subr.bf16.mxu0 0
        %1370 = vmatpush1.bf16.msra.mxu0 0
        %1371 = vmatprep.subr.bf16.mxu0 0
        %1372 = vmatpush1.bf16.msra.mxu0 0
        %1373 = vmatprep.mubr.bf16.mxu0 0
        %1374 = vmatmul.mubr.bf16.gmra.mrb[0].mxu0 %v1336
        %v1375 = vpop.f32.mrb[0].mxu0
        %v1376 = vadd.f32 0.0, %v1375
        %v1377 = vpop.f32.mrb[0].mxu0
        %v1378 = vpop.f32.mrb[0].mxu0
        %v1379 = vpop.f32.mrb[0].mxu0
        %1380 = vdwg.mxu0
        %1382 = vrot.lane.b32.xlu0 %v1284, 8
        %v1383 = vpop.permute.xlu0 %1382
        %1386 = vrot.lane.b32.xlu0 %v1330, 16
        %v1387 = vpop.permute.xlu0 %1386
        %1390 = vrot.lane.b32.xlu0 %v1376, 24
        %v1391 = vpop.permute.xlu0 %1390
        %v1393 = vsel %vm963, %v1238, %v1383
        %vm1394 = vcmask 130048
        %v1395 = vsel %vm1394, %v1393, %v1387
        %vm1396 = vcmask 195584
        %v1397 = vsel %vm1396, %v1395, %v1391
        %v1398 = vadd.f32 %v696, %v1397
        %v1399 = vld [vmem:[#allocation17] sm:$0x1]
        %v1400 = vld [vmem:[#allocation19] sm:$0x1]
        %v1401 = vsel %vm699, %v1398, 0.0
        %1402 = vadd.xlane.f32.xlu0 %v1401
        %v1403 = vpop.xlane.xlu0 %1402
        %v1404 = vmul.f32 %v1403, %v703
        %v1405 = vsub.f32 %v1398, %v1404
        %v1406 = vmul.f32 %v1405, %v1405
        %v1407 = vsel %vm699, %v1406, 0.0
        %1408 = vadd.xlane.f32.xlu0 %v1407
        %v1409 = vpop.xlane.xlu0 %1408
        %v1410 = vmul.f32 %v1409, %v703
        %v1411 = vadd.f32 %v1410, 1e-05
        %v1412 = vrsqrt.pop %v1411
        %v1413 = vmul.f32 %v1405, %v1412
        %v1415 = vlaneseq
        %v1416 = vshrl.u32 %v1415, 7
        %v1417 = vsub.s32 0, %v1416
        %v1418 = vrot.slane %v1399, %v1417
        %v1420 = vmul.f32 %v1413, %v1418
        %v1422 = vlaneseq
        %v1423 = vshrl.u32 %v1422, 7
        %v1424 = vsub.s32 0, %v1423
        %v1425 = vrot.slane %v1400, %v1424
        %v1427 = vadd.f32 %v1420, %v1425
        %v1428 = vpack.c.bf16 %v1427, %v1427
        %v1429 = vld [vmem:[#allocation20] sm:$0xf]
        %v1430 = vld [vmem:[#allocation20 + $0x4] sm:$0xf]
        %v1431 = vld [vmem:[#allocation20 + $0x8] sm:$0xf]
        %v1432 = vld [vmem:[#allocation20 + $0xc] sm:$0xf]
        %v1433 = vld [vmem:[#allocation22] sm:$0x1]
        %v1435 = vlaneseq
        %v1436 = vshrl.u32 %v1435, 7
        %v1437 = vsub.s32 0, %v1436
        %v1438 = vrot.slane %v1433, %v1437
        %v1444 = vunpack.c.l.b16 %v1429
        %v1445 = vunpack.c.l.b16 %v1430
        %v1446 = vunpack.c.l.b16 %v1431
        %v1447 = vunpack.c.l.b16 %v1432
        %v1448 = vpack.c.b16 %v1445, %v1444
        %v1449 = vpack.c.b16 %v1447, %v1446
        %v1453 = vsel %vm699, %v1428, 0
        %1455 = vmatprep.subr.bf16.mxu0 0
        %1456 = vmatpush1.bf16.msra.mxu0 %v1448
        %1457 = vmatprep.subr.bf16.mxu0 0
        %1458 = vmatpush1.bf16.msra.mxu0 %v1449
        %1459 = vmatprep.subr.bf16.mxu0 0
        %1460 = vmatpush1.bf16.msra.mxu0 0
        %1461 = vmatprep.subr.bf16.mxu0 0
        %1462 = vmatpush1.bf16.msra.mxu0 0
        %1463 = vmatprep.subr.bf16.mxu0 0
        %1464 = vmatpush1.bf16.msra.mxu0 0
        %1465 = vmatprep.subr.bf16.mxu0 0
        %1466 = vmatpush1.bf16.msra.mxu0 0
        %1467 = vmatprep.subr.bf16.mxu0 0
        %1468 = vmatpush1.bf16.msra.mxu0 0
        %1469 = vmatprep.subr.bf16.mxu0 0
        %1470 = vmatpush1.bf16.msra.mxu0 0
        %1471 = vmatprep.subr.bf16.mxu0 0
        %1472 = vmatpush1.bf16.msra.mxu0 0
        %1473 = vmatprep.subr.bf16.mxu0 0
        %1474 = vmatpush1.bf16.msra.mxu0 0
        %1475 = vmatprep.subr.bf16.mxu0 0
        %1476 = vmatpush1.bf16.msra.mxu0 0
        %1477 = vmatprep.subr.bf16.mxu0 0
        %1478 = vmatpush1.bf16.msra.mxu0 0
        %1479 = vmatprep.subr.bf16.mxu0 0
        %1480 = vmatpush1.bf16.msra.mxu0 0
        %1481 = vmatprep.subr.bf16.mxu0 0
        %1482 = vmatpush1.bf16.msra.mxu0 0
        %1483 = vmatprep.subr.bf16.mxu0 0
        %1484 = vmatpush1.bf16.msra.mxu0 0
        %1485 = vmatprep.subr.bf16.mxu0 0
        %1486 = vmatpush1.bf16.msra.mxu0 0
        %1487 = vmatprep.mubr.bf16.mxu0 0
        %1488 = vmatmul.mubr.bf16.gmra.mrb[0].mxu0 %v1453
        %v1489 = vpop.f32.mrb[0].mxu0
        %v1490 = vadd.f32 %v1438, %v1489
        %v1491 = vpop.f32.mrb[0].mxu0
        %v1492 = vpop.f32.mrb[0].mxu0
        %v1493 = vpop.f32.mrb[0].mxu0
        %1494 = vdwg.mxu0
        %v1495 = vmul.f32 %v1490, 0.5
        %v1496 = vmul.f32 %v1490, 0.044715
        %v1497 = vmul.f32 %v1496, %v1490
        %v1498 = vmul.f32 %v1497, %v1490
        %v1499 = vadd.f32 %v1490, %v1498
        %v1500 = vmul.f32 %v1499, 0.7978846
        %v1501 = vtanh.pop %v1500
        %v1502 = vadd.f32 %v1501, 1.0
        %v1503 = vmul.f32 %v1495, %v1502
        %v1504 = vpack.c.bf16 %v1503, %v1503
        %v1505 = vld [vmem:[#allocation23] sm:$0xf]
        %v1506 = vld [vmem:[#allocation23 + $0x4] sm:$0xf]
        %v1507 = vld [vmem:[#allocation23 + $0x8] sm:$0xf]
        %v1508 = vld [vmem:[#allocation23 + $0xc] sm:$0xf]
        %v1509 = vld [vmem:[#allocation23 + $0x10] sm:$0xf]
        %v1510 = vld [vmem:[#allocation23 + $0x14] sm:$0xf]
        %v1511 = vld [vmem:[#allocation23 + $0x18] sm:$0xf]
        %v1512 = vld [vmem:[#allocation23 + $0x1c] sm:$0xf]
        %v1513 = vld [vmem:[#allocation25] sm:$0x1]
        %v1515 = vlaneseq
        %v1516 = vshrl.u32 %v1515, 7
        %v1517 = vsub.s32 0, %v1516
        %v1518 = vrot.slane %v1513, %v1517
        %v1528 = vunpack.c.l.b16 %v1505
        %v1529 = vunpack.c.l.b16 %v1506
        %v1530 = vunpack.c.l.b16 %v1507
        %v1531 = vunpack.c.l.b16 %v1508
        %v1532 = vunpack.c.l.b16 %v1509
        %v1533 = vunpack.c.l.b16 %v1510
        %v1534 = vunpack.c.l.b16 %v1511
        %v1535 = vunpack.c.l.b16 %v1512
        %v1536 = vpack.c.b16 %v1529, %v1528
        %v1537 = vpack.c.b16 %v1531, %v1530
        %v1538 = vpack.c.b16 %v1533, %v1532
        %v1539 = vpack.c.b16 %v1535, %v1534
        %vm1544 = vcmask 523264
        %v1546 = vsel %vm1544, %v1504, 0
        %1548 = vmatprep.subr.bf16.mxu0 0
        %1549 = vmatpush1.bf16.msra.mxu0 %v1536
        %1550 = vmatprep.subr.bf16.mxu0 0
        %1551 = vmatpush1.bf16.msra.mxu0 %v1537
        %1552 = vmatprep.subr.bf16.mxu0 0
        %1553 = vmatpush1.bf16.msra.mxu0 %v1538
        %1554 = vmatprep.subr.bf16.mxu0 0
        %1555 = vmatpush1.bf16.msra.mxu0 %v1539
        %1556 = vmatprep.subr.bf16.mxu0 0
        %1557 = vmatpush1.bf16.msra.mxu0 0
        %1558 = vmatprep.subr.bf16.mxu0 0
        %1559 = vmatpush1.bf16.msra.mxu0 0
        %1560 = vmatprep.subr.bf16.mxu0 0
        %1561 = vmatpush1.bf16.msra.mxu0 0
        %1562 = vmatprep.subr.bf16.mxu0 0
        %1563 = vmatpush1.bf16.msra.mxu0 0
        %1564 = vmatprep.subr.bf16.mxu0 0
        %1565 = vmatpush1.bf16.msra.mxu0 0
        %1566 = vmatprep.subr.bf16.mxu0 0
        %1567 = vmatpush1.bf16.msra.mxu0 0
        %1568 = vmatprep.subr.bf16.mxu0 0
        %1569 = vmatpush1.bf16.msra.mxu0 0
        %1570 = vmatprep.subr.bf16.mxu0 0
        %1571 = vmatpush1.bf16.msra.mxu0 0
        %1572 = vmatprep.subr.bf16.mxu0 0
        %1573 = vmatpush1.bf16.msra.mxu0 0
        %1574 = vmatprep.subr.bf16.mxu0 0
        %1575 = vmatpush1.bf16.msra.mxu0 0
        %1576 = vmatprep.subr.bf16.mxu0 0
        %1577 = vmatpush1.bf16.msra.mxu0 0
        %1578 = vmatprep.subr.bf16.mxu0 0
        %1579 = vmatpush1.bf16.msra.mxu0 0
        %1580 = vmatprep.mubr.bf16.mxu0 0
        %1581 = vmatmul.mubr.bf16.gmra.mrb[0].mxu0 %v1546
        %v1582 = vpop.f32.mrb[0].mxu0
        %v1583 = vadd.f32 %v1518, %v1582
        %v1584 = vpop.f32.mrb[0].mxu0
        %v1585 = vpop.f32.mrb[0].mxu0
        %v1586 = vpop.f32.mrb[0].mxu0
        %1587 = vdwg.mxu0
        %v1588 = vadd.f32 %v1398, %v1583
        %1589 = vst.msk [vmem:[%s694] sm:$0xff] %vm699, %v1588
        %s1590 = sand.u32 %s367, 1
        %s1591 = scalar_lea.sflag [#allocation4], %s1590
        %s1592 = sand.u32 %s367, 1
        %s1593 = smul.addr %s1592, 8
        %s1594 = scalar_lea.vmem [#allocation26], %s1593
        // Predicated region
        $region141: #{tpu_custom_call.1} parent=79 // pred_check
          %p1595 = pneg %p377
        $region142: #{tpu_custom_call.1} parent=79 // pred_check_branch
          %1597 = sbr.rel (%p1595) target = $region144
        $region143: #{tpu_custom_call.1} parent=79 // pred_region
          %s1599 = ssub.s32 128, 128
          %1600 = vsyncadd %s1591, %s1599
          %s1601 = smul.addr %s39, 128
          %s1602 = scalar_lea.hbm %s15, %s1601
          %s1604 = sshll.u32 %s1594, 4
          %s1605 = int_to_ptr.vmem [resolvable:$true] %s1604
          %1607 = dma.vmem_to_hbm [thread:$0]  %s1605, 128, %s1602, %s1591
        $region144: #{tpu_custom_call.1} parent=79 // pred_fallthru
          _
      $region80: #{tpu_custom_call.1} parent=5 // pred_fallthru
        _
      %p1608 = scmp.le.s32.totalorder 2, %s34
      // Predicated region
      $region145: #{tpu_custom_call.1} parent=5 // pred_check
        %p1609 = pneg %p1608
      $region146: #{tpu_custom_call.1} parent=5 // pred_check_branch
        %1611 = sbr.rel (%p1609) target = $region148
      $region147: #{tpu_custom_call.1} parent=5 // pred_region
        %s1612 = ssub.s32 %s34, 2
        // Predicated region
        $region149: #{tpu_custom_call.1} parent=147 // pred_check
          %p1613 = pneg %p383
        $region150: #{tpu_custom_call.1} parent=147 // pred_check_branch
          %1615 = sbr.rel (%p1613) target = $region152
        $region151: #{tpu_custom_call.1} parent=147 // pred_region
          %s1616 = sand.u32 %s368, 1
          %s1617 = scalar_lea.sflag [#allocation4], %s1616
          %s1618 = sand.u32 %s368, 1
          %s1619 = smul.addr %s1618, 8
          %s1620 = scalar_lea.vmem [#allocation26], %s1619
          %1621 = dma.done %s1617, 128
        $region152: #{tpu_custom_call.1} parent=147 // pred_fallthru
          _
      $region148: #{tpu_custom_call.1} parent=5 // pred_fallthru
        _
    $region6: #{tpu_custom_call.1} parent=1 // loop_footer
      %s38 = sadd.s32 1, %s34
    $region7: #{tpu_custom_call.1} parent=1 // loop_footer_branch
      %33 = sbr.rel target = $region3
    $region8: #{tpu_custom_call.1} parent=1 // loop_exit
      _
    %1622 = vsyncpa [#allocation3], 1
    %s1623 = scalar_lea.sflag [#allocation3], 1
    %1624 = vsyncpa %s1623, 1
    %1625 = vsyncpa [#allocation6], 1
    %1626 = vsyncpa [#allocation9], 1
    %1627 = vsyncpa [#allocation12], 1
    %1628 = vsyncpa [#allocation15], 1
    %1629 = vsyncpa [#allocation18], 1
    %1630 = vsyncpa [#allocation21], 1
    %1631 = vsyncpa [#allocation24], 1
    %1632 = vsyncpa [#allocation4], 1
    %s1633 = scalar_lea.sflag [#allocation4], 1
    %1634 = vsyncpa %s1633, 1

</llo_original>
